<compile_context>
chip_gen: v7x
topology: tpu7x:2x2x1
jax: 0.10.0
libtpu: 0.0.40
codegen_flags: <defaults>
</compile_context>

<pallas_src>
import jax
import jax.numpy as jnp
import numpy as np
from jax.experimental import pallas as pl
from jax.experimental.pallas import tpu as pltpu

# ------------------------- gaussian attribute layout -------------------------
FEATURE_DIM = 8
ATTR_NAMES = ("xyz", "scaling", "rotation", "opacity", "features")
NUM_ATTRS = len(ATTR_NAMES)


# ------------------------------ kernel ---------------------------------------
def _identity_copy_kernel(*refs):
    # refs = (in_0 .. in_4, out_0 .. out_4, dma_sems)
    in_refs = refs[:NUM_ATTRS]
    out_refs = refs[NUM_ATTRS:2 * NUM_ATTRS]
    sems = refs[-1]

    copies = [
        pltpu.make_async_copy(in_refs[i], out_refs[i], sems.at[i])
        for i in range(NUM_ATTRS)
    ]
    # Launch all HBM->HBM DMAs first so the DMA engines overlap, then wait.
    for cp in copies:
        cp.start()
    for cp in copies:
        cp.wait()


# ------------------------------ wrapper ---------------------------------------
def identity_deform(gaussians, iteration=0, camera=None, compute_loss=True):
    """Pallas equivalent of Identity.forward: returns (gaussians, {})."""
    del iteration, camera, compute_loss  # unused by Identity, kept for parity

    attrs = [gaussians[name] for name in ATTR_NAMES]
    total_bytes = sum(int(a.size) * a.dtype.itemsize for a in attrs)

    out = pl.pallas_call(
        _identity_copy_kernel,
        out_shape=tuple(jax.ShapeDtypeStruct(a.shape, a.dtype) for a in attrs),
        in_specs=[pl.BlockSpec(memory_space=pl.ANY)] * NUM_ATTRS,
        out_specs=tuple(pl.BlockSpec(memory_space=pl.ANY) for _ in attrs),
        scratch_shapes=[pltpu.SemaphoreType.DMA((NUM_ATTRS,))],
        cost_estimate=pl.CostEstimate(
            flops=0, transcendentals=0, bytes_accessed=2 * total_bytes),
    )(*attrs)

    new_gaussians = dict(zip(ATTR_NAMES, out))
    # Identity produces no non-rigid regularization losses.
    loss_reg = {}
    return new_gaussians, loss_reg


# --------------------------------- main ---------------------------------------
if __name__ == "__main__":
    key = jax.random.PRNGKey(0)
    keys = jax.random.split(key, 8)

    N = 1000  # small, intentionally not tile/lane aligned

    gaussians = {
        "xyz":      jax.random.normal(keys[0], (N, 3), jnp.float32) * 0.8,
        "scaling":  jax.random.normal(keys[1], (N, 3), jnp.float32) * 0.1,
        "rotation": jax.random.normal(keys[2], (N, 4), jnp.float32) * 0.1,
        "opacity":  jax.random.normal(keys[3], (N, 1), jnp.float32),
        # bf16 attribute exercises the dtype-preservation fix from the review.
        "features": jax.random.normal(keys[4], (N, FEATURE_DIM), jnp.bfloat16),
    }
    camera = {"frame_id": 3}   # unused by Identity; mirrors the torch signature

    out_gaussians, loss_reg = identity_deform(
        gaussians, iteration=100, camera=camera, compute_loss=True)
    jax.block_until_ready(out_gaussians)

    # Identity semantics: every attribute passes through bit-exactly with its
    # original dtype, and the loss dict is empty.
    for name in ATTR_NAMES:
        assert out_gaussians[name].dtype == gaussians[name].dtype, name
        assert out_gaussians[name].shape == gaussians[name].shape, name
        np.testing.assert_array_equal(
            np.asarray(out_gaussians[name], dtype=np.float32),
            np.asarray(gaussians[name], dtype=np.float32))
    assert loss_reg == {}, f"expected empty loss dict, got {loss_reg}"

    print("KERNEL_OK")
</pallas_src>

<mosaic_0001>
module attributes {stable_mosaic.version = 11 : i64} {
  func.func @_identity_copy_kernel(%arg0: memref<1000x3xf32, #tpu.memory_space<any>>, %arg1: memref<1000x3xf32, #tpu.memory_space<any>>, %arg2: memref<1000x4xf32, #tpu.memory_space<any>>, %arg3: memref<1000x1xf32, #tpu.memory_space<any>>, %arg4: memref<1000x8xbf16, #tpu.memory_space<any>>, %arg5: memref<1000x3xf32, #tpu.memory_space<any>>, %arg6: memref<1000x3xf32, #tpu.memory_space<any>>, %arg7: memref<1000x4xf32, #tpu.memory_space<any>>, %arg8: memref<1000x1xf32, #tpu.memory_space<any>>, %arg9: memref<1000x8xbf16, #tpu.memory_space<any>>, %arg10: memref<5x!tpu.dma_semaphore, #tpu.memory_space<semaphore_mem>>) attributes {dimension_semantics = [], scalar_prefetch = 0 : i64, scratch_operands = 1 : i64, tpu.core_type = #tpu.core_type<tc>} {
    %c0_i32 = arith.constant 0 : i32
    %0 = tpu.memref_slice %arg10[%c0_i32] : memref<5x!tpu.dma_semaphore, #tpu.memory_space<semaphore_mem>> -> memref<1x!tpu.dma_semaphore, #tpu.memory_space<semaphore_mem>>
    %1 = tpu.memref_squeeze %0 : memref<1x!tpu.dma_semaphore, #tpu.memory_space<semaphore_mem>> -> memref<!tpu.dma_semaphore, #tpu.memory_space<semaphore_mem>>
    tpu.enqueue_dma source(%arg0 : memref<1000x3xf32, #tpu.memory_space<any>>) target(%arg5 : memref<1000x3xf32, #tpu.memory_space<any>>) target_semaphore(%1 : memref<!tpu.dma_semaphore, #tpu.memory_space<semaphore_mem>>)
    %c1_i32 = arith.constant 1 : i32
    %2 = tpu.memref_slice %arg10[%c1_i32] : memref<5x!tpu.dma_semaphore, #tpu.memory_space<semaphore_mem>> -> memref<1x!tpu.dma_semaphore, #tpu.memory_space<semaphore_mem>>
    %3 = tpu.memref_squeeze %2 : memref<1x!tpu.dma_semaphore, #tpu.memory_space<semaphore_mem>> -> memref<!tpu.dma_semaphore, #tpu.memory_space<semaphore_mem>>
    tpu.enqueue_dma source(%arg1 : memref<1000x3xf32, #tpu.memory_space<any>>) target(%arg6 : memref<1000x3xf32, #tpu.memory_space<any>>) target_semaphore(%3 : memref<!tpu.dma_semaphore, #tpu.memory_space<semaphore_mem>>)
    %c2_i32 = arith.constant 2 : i32
    %4 = tpu.memref_slice %arg10[%c2_i32] : memref<5x!tpu.dma_semaphore, #tpu.memory_space<semaphore_mem>> -> memref<1x!tpu.dma_semaphore, #tpu.memory_space<semaphore_mem>>
    %5 = tpu.memref_squeeze %4 : memref<1x!tpu.dma_semaphore, #tpu.memory_space<semaphore_mem>> -> memref<!tpu.dma_semaphore, #tpu.memory_space<semaphore_mem>>
    tpu.enqueue_dma source(%arg2 : memref<1000x4xf32, #tpu.memory_space<any>>) target(%arg7 : memref<1000x4xf32, #tpu.memory_space<any>>) target_semaphore(%5 : memref<!tpu.dma_semaphore, #tpu.memory_space<semaphore_mem>>)
    %c3_i32 = arith.constant 3 : i32
    %6 = tpu.memref_slice %arg10[%c3_i32] : memref<5x!tpu.dma_semaphore, #tpu.memory_space<semaphore_mem>> -> memref<1x!tpu.dma_semaphore, #tpu.memory_space<semaphore_mem>>
    %7 = tpu.memref_squeeze %6 : memref<1x!tpu.dma_semaphore, #tpu.memory_space<semaphore_mem>> -> memref<!tpu.dma_semaphore, #tpu.memory_space<semaphore_mem>>
    tpu.enqueue_dma source(%arg3 : memref<1000x1xf32, #tpu.memory_space<any>>) target(%arg8 : memref<1000x1xf32, #tpu.memory_space<any>>) target_semaphore(%7 : memref<!tpu.dma_semaphore, #tpu.memory_space<semaphore_mem>>)
    %c4_i32 = arith.constant 4 : i32
    %8 = tpu.memref_slice %arg10[%c4_i32] : memref<5x!tpu.dma_semaphore, #tpu.memory_space<semaphore_mem>> -> memref<1x!tpu.dma_semaphore, #tpu.memory_space<semaphore_mem>>
    %9 = tpu.memref_squeeze %8 : memref<1x!tpu.dma_semaphore, #tpu.memory_space<semaphore_mem>> -> memref<!tpu.dma_semaphore, #tpu.memory_space<semaphore_mem>>
    tpu.enqueue_dma source(%arg4 : memref<1000x8xbf16, #tpu.memory_space<any>>) target(%arg9 : memref<1000x8xbf16, #tpu.memory_space<any>>) target_semaphore(%9 : memref<!tpu.dma_semaphore, #tpu.memory_space<semaphore_mem>>)
    %c0_i32_0 = arith.constant 0 : i32
    %10 = tpu.memref_slice %arg10[%c0_i32_0] : memref<5x!tpu.dma_semaphore, #tpu.memory_space<semaphore_mem>> -> memref<1x!tpu.dma_semaphore, #tpu.memory_space<semaphore_mem>>
    %11 = tpu.memref_squeeze %10 : memref<1x!tpu.dma_semaphore, #tpu.memory_space<semaphore_mem>> -> memref<!tpu.dma_semaphore, #tpu.memory_space<semaphore_mem>>
    tpu.wait_dma2 semaphore(%11 : memref<!tpu.dma_semaphore, #tpu.memory_space<semaphore_mem>>) src(%arg0 : memref<1000x3xf32, #tpu.memory_space<any>>) dst(%arg5 : memref<1000x3xf32, #tpu.memory_space<any>>)
    %c1_i32_1 = arith.constant 1 : i32
    %12 = tpu.memref_slice %arg10[%c1_i32_1] : memref<5x!tpu.dma_semaphore, #tpu.memory_space<semaphore_mem>> -> memref<1x!tpu.dma_semaphore, #tpu.memory_space<semaphore_mem>>
    %13 = tpu.memref_squeeze %12 : memref<1x!tpu.dma_semaphore, #tpu.memory_space<semaphore_mem>> -> memref<!tpu.dma_semaphore, #tpu.memory_space<semaphore_mem>>
    tpu.wait_dma2 semaphore(%13 : memref<!tpu.dma_semaphore, #tpu.memory_space<semaphore_mem>>) src(%arg1 : memref<1000x3xf32, #tpu.memory_space<any>>) dst(%arg6 : memref<1000x3xf32, #tpu.memory_space<any>>)
    %c2_i32_2 = arith.constant 2 : i32
    %14 = tpu.memref_slice %arg10[%c2_i32_2] : memref<5x!tpu.dma_semaphore, #tpu.memory_space<semaphore_mem>> -> memref<1x!tpu.dma_semaphore, #tpu.memory_space<semaphore_mem>>
    %15 = tpu.memref_squeeze %14 : memref<1x!tpu.dma_semaphore, #tpu.memory_space<semaphore_mem>> -> memref<!tpu.dma_semaphore, #tpu.memory_space<semaphore_mem>>
    tpu.wait_dma2 semaphore(%15 : memref<!tpu.dma_semaphore, #tpu.memory_space<semaphore_mem>>) src(%arg2 : memref<1000x4xf32, #tpu.memory_space<any>>) dst(%arg7 : memref<1000x4xf32, #tpu.memory_space<any>>)
    %c3_i32_3 = arith.constant 3 : i32
    %16 = tpu.memref_slice %arg10[%c3_i32_3] : memref<5x!tpu.dma_semaphore, #tpu.memory_space<semaphore_mem>> -> memref<1x!tpu.dma_semaphore, #tpu.memory_space<semaphore_mem>>
    %17 = tpu.memref_squeeze %16 : memref<1x!tpu.dma_semaphore, #tpu.memory_space<semaphore_mem>> -> memref<!tpu.dma_semaphore, #tpu.memory_space<semaphore_mem>>
    tpu.wait_dma2 semaphore(%17 : memref<!tpu.dma_semaphore, #tpu.memory_space<semaphore_mem>>) src(%arg3 : memref<1000x1xf32, #tpu.memory_space<any>>) dst(%arg8 : memref<1000x1xf32, #tpu.memory_space<any>>)
    %c4_i32_4 = arith.constant 4 : i32
    %18 = tpu.memref_slice %arg10[%c4_i32_4] : memref<5x!tpu.dma_semaphore, #tpu.memory_space<semaphore_mem>> -> memref<1x!tpu.dma_semaphore, #tpu.memory_space<semaphore_mem>>
    %19 = tpu.memref_squeeze %18 : memref<1x!tpu.dma_semaphore, #tpu.memory_space<semaphore_mem>> -> memref<!tpu.dma_semaphore, #tpu.memory_space<semaphore_mem>>
    tpu.wait_dma2 semaphore(%19 : memref<!tpu.dma_semaphore, #tpu.memory_space<semaphore_mem>>) src(%arg4 : memref<1000x8xbf16, #tpu.memory_space<any>>) dst(%arg9 : memref<1000x8xbf16, #tpu.memory_space<any>>)
    return
  }
}

</mosaic_0001>

<llo_original>
// kernel: tpu_custom_call.1
$region0: #{tpu_custom_call.1}
  #allocation0 [shape = 'u32[]', space=smem, size = 0x4, offset = 0x4, fixed_abs, tag = 'smem constant byte address 0x4 - core index']
  #allocation1 [shape = 'u32[144,128]{1,0:T(1,128)}', space=vmem, size = 0x12000, scoped, tag = 'internal scratch']
  #allocation2 [shape = 's32[5]{0}', space=sflag, size = 0x14, scoped, tag = 'scratch operand']
  #allocation3 [shape = 's32[]', space=sflag, size = 0x4, offset = 0, fixed_abs, tag = 'sflag constant byte address 0x0 - dummy sync flag']
  #allocation4 [shape = 's32[]', space=sflag, size = 0x4, offset = 0, fixed_abs, tag = 'sflag constant byte address 0x0 - dummy sync flag']
  #allocation5 [shape = 's32[]', space=sflag, size = 0x4, offset = 0, fixed_abs, tag = 'sflag constant byte address 0x0 - dummy sync flag']
  #allocation6 [shape = 's32[]', space=sflag, size = 0x4, offset = 0, fixed_abs, tag = 'sflag constant byte address 0x0 - dummy sync flag']
  #allocation7 [shape = 's32[]', space=sflag, size = 0x4, offset = 0, fixed_abs, tag = 'sflag constant byte address 0x0 - dummy sync flag']
  %s0 = inlined_call_operand.vmem [shape: f32[1000,3], index: 0, kind: input, shape index: {}]
  %s1 = inlined_call_operand.vmem [shape: f32[1000,3], index: 1, kind: input, shape index: {}]
  %s2 = inlined_call_operand.vmem [shape: f32[1000,4], index: 2, kind: input, shape index: {}]
  %s3 = inlined_call_operand.vmem [shape: f32[1000,1], index: 3, kind: input, shape index: {}]
  %s4 = inlined_call_operand.vmem [shape: bf16[1000,8], index: 4, kind: input, shape index: {}]
  %s5 = inlined_call_operand.vmem [shape: f32[1000,3], index: 5, kind: output, shape index: {0}]
  %s6 = inlined_call_operand.vmem [shape: f32[1000,3], index: 6, kind: output, shape index: {1}]
  %s7 = inlined_call_operand.vmem [shape: f32[1000,4], index: 7, kind: output, shape index: {2}]
  %s8 = inlined_call_operand.vmem [shape: f32[1000,1], index: 8, kind: output, shape index: {3}]
  %s9 = inlined_call_operand.vmem [shape: bf16[1000,8], index: 9, kind: output, shape index: {4}]
  %10 = xla_tuple %s5, %s6, %s7, %s8, %s9
  %s11 = sld [smem:[#allocation0]]
  $region175: #{tpu_custom_call.1} parent=0
    _
  %s13 = ssub.s32 1, %s11
  %s14 = scalar_select 0, %s13, %s11
  %p16 = scmp.lt.u32.totalorder 1000, 8
  %p17 = pneg %p16
  // Predicated region
  $region2: #{tpu_custom_call.1} parent=0 // pred_check
    _
  $region3: #{tpu_custom_call.1} parent=0 // pred_check_branch
    %19 = sbr.rel (%p16) target = $region5
  $region4: #{tpu_custom_call.1} parent=0 // pred_region
    %s34 = sand.u32 1000, 7
    %p35 = scmp.eq.s32.totalorder %s34, 0
    // Predicated region
    $region17: #{tpu_custom_call.1} parent=4 // pred_check
      %p36 = pneg %p35
    $region18: #{tpu_custom_call.1} parent=4 // pred_check_branch
      %38 = sbr.rel (%p36) target = $region20
    $region19: #{tpu_custom_call.1} parent=4 // pred_region
      loop: start=0, step=1, limit=1
      $region21: #{tpu_custom_call.1} parent=19 // loop_pre_header
        _
      $region22: #{tpu_custom_call.1} parent=19 // loop_header
        %s40 = sphi 0, %s44
        %p41 = scmp.ge.s32.totalorder %s40, 1
        %s45 = sphi %s0, %s0
        %s46 = sphi %s5, %s5
      $region23: #{tpu_custom_call.1} parent=19 // loop_header_branch
        %43 = sbr.rel (%p41) target = $region27
      $region24: #{tpu_custom_call.1} parent=19 // loop_body
        %v47 = vld [vmem:[%s45] sm:$0xff]
        %48 = vst [vmem:[%s46] sm:$0xff] %v47
        %v49 = vld [vmem:[%s45 + $0x8] sm:$0xff]
        %50 = vst [vmem:[%s46 + $0x8] sm:$0xff] %v49
        %v51 = vld [vmem:[%s45 + $0x10] sm:$0xff]
        %52 = vst [vmem:[%s46 + $0x10] sm:$0xff] %v51
        %v53 = vld [vmem:[%s45 + $0x18] sm:$0xff]
        %54 = vst [vmem:[%s46 + $0x18] sm:$0xff] %v53
        %v55 = vld [vmem:[%s45 + $0x20] sm:$0xff]
        %56 = vst [vmem:[%s46 + $0x20] sm:$0xff] %v55
        %v57 = vld [vmem:[%s45 + $0x28] sm:$0xff]
        %58 = vst [vmem:[%s46 + $0x28] sm:$0xff] %v57
        %v59 = vld [vmem:[%s45 + $0x30] sm:$0xff]
        %60 = vst [vmem:[%s46 + $0x30] sm:$0xff] %v59
        %v61 = vld [vmem:[%s45 + $0x38] sm:$0xff]
        %62 = vst [vmem:[%s46 + $0x38] sm:$0xff] %v61
        %v63 = vld [vmem:[%s45 + $0x40] sm:$0xff]
        %64 = vst [vmem:[%s46 + $0x40] sm:$0xff] %v63
        %v65 = vld [vmem:[%s45 + $0x48] sm:$0xff]
        %66 = vst [vmem:[%s46 + $0x48] sm:$0xff] %v65
        %v67 = vld [vmem:[%s45 + $0x50] sm:$0xff]
        %68 = vst [vmem:[%s46 + $0x50] sm:$0xff] %v67
        %v69 = vld [vmem:[%s45 + $0x58] sm:$0xff]
        %70 = vst [vmem:[%s46 + $0x58] sm:$0xff] %v69
        %v71 = vld [vmem:[%s45 + $0x60] sm:$0xff]
        %72 = vst [vmem:[%s46 + $0x60] sm:$0xff] %v71
        %v73 = vld [vmem:[%s45 + $0x68] sm:$0xff]
        %74 = vst [vmem:[%s46 + $0x68] sm:$0xff] %v73
        %v75 = vld [vmem:[%s45 + $0x70] sm:$0xff]
        %76 = vst [vmem:[%s46 + $0x70] sm:$0xff] %v75
        %v77 = vld [vmem:[%s45 + $0x78] sm:$0xff]
        %78 = vst [vmem:[%s46 + $0x78] sm:$0xff] %v77
        %v79 = vld [vmem:[%s45 + $0x80] sm:$0xff]
        %80 = vst [vmem:[%s46 + $0x80] sm:$0xff] %v79
        %v81 = vld [vmem:[%s45 + $0x88] sm:$0xff]
        %82 = vst [vmem:[%s46 + $0x88] sm:$0xff] %v81
        %v83 = vld [vmem:[%s45 + $0x90] sm:$0xff]
        %84 = vst [vmem:[%s46 + $0x90] sm:$0xff] %v83
        %v85 = vld [vmem:[%s45 + $0x98] sm:$0xff]
        %86 = vst [vmem:[%s46 + $0x98] sm:$0xff] %v85
        %v87 = vld [vmem:[%s45 + $0xa0] sm:$0xff]
        %88 = vst [vmem:[%s46 + $0xa0] sm:$0xff] %v87
        %v89 = vld [vmem:[%s45 + $0xa8] sm:$0xff]
        %90 = vst [vmem:[%s46 + $0xa8] sm:$0xff] %v89
        %v91 = vld [vmem:[%s45 + $0xb0] sm:$0xff]
        %92 = vst [vmem:[%s46 + $0xb0] sm:$0xff] %v91
        %v93 = vld [vmem:[%s45 + $0xb8] sm:$0xff]
        %94 = vst [vmem:[%s46 + $0xb8] sm:$0xff] %v93
        %v95 = vld [vmem:[%s45 + $0xc0] sm:$0xff]
        %96 = vst [vmem:[%s46 + $0xc0] sm:$0xff] %v95
        %v97 = vld [vmem:[%s45 + $0xc8] sm:$0xff]
        %98 = vst [vmem:[%s46 + $0xc8] sm:$0xff] %v97
        %v99 = vld [vmem:[%s45 + $0xd0] sm:$0xff]
        %100 = vst [vmem:[%s46 + $0xd0] sm:$0xff] %v99
        %v101 = vld [vmem:[%s45 + $0xd8] sm:$0xff]
        %102 = vst [vmem:[%s46 + $0xd8] sm:$0xff] %v101
        %v103 = vld [vmem:[%s45 + $0xe0] sm:$0xff]
        %104 = vst [vmem:[%s46 + $0xe0] sm:$0xff] %v103
        %v105 = vld [vmem:[%s45 + $0xe8] sm:$0xff]
        %106 = vst [vmem:[%s46 + $0xe8] sm:$0xff] %v105
        %v107 = vld [vmem:[%s45 + $0xf0] sm:$0xff]
        %108 = vst [vmem:[%s46 + $0xf0] sm:$0xff] %v107
        %v109 = vld [vmem:[%s45 + $0xf8] sm:$0xff]
        %110 = vst [vmem:[%s46 + $0xf8] sm:$0xff] %v109
        %v111 = vld [vmem:[%s45 + $0x100] sm:$0xff]
        %112 = vst [vmem:[%s46 + $0x100] sm:$0xff] %v111
        %v113 = vld [vmem:[%s45 + $0x108] sm:$0xff]
        %114 = vst [vmem:[%s46 + $0x108] sm:$0xff] %v113
        %v115 = vld [vmem:[%s45 + $0x110] sm:$0xff]
        %116 = vst [vmem:[%s46 + $0x110] sm:$0xff] %v115
        %v117 = vld [vmem:[%s45 + $0x118] sm:$0xff]
        %118 = vst [vmem:[%s46 + $0x118] sm:$0xff] %v117
        %v119 = vld [vmem:[%s45 + $0x120] sm:$0xff]
        %120 = vst [vmem:[%s46 + $0x120] sm:$0xff] %v119
        %v121 = vld [vmem:[%s45 + $0x128] sm:$0xff]
        %122 = vst [vmem:[%s46 + $0x128] sm:$0xff] %v121
        %v123 = vld [vmem:[%s45 + $0x130] sm:$0xff]
        %124 = vst [vmem:[%s46 + $0x130] sm:$0xff] %v123
        %v125 = vld [vmem:[%s45 + $0x138] sm:$0xff]
        %126 = vst [vmem:[%s46 + $0x138] sm:$0xff] %v125
        %v127 = vld [vmem:[%s45 + $0x140] sm:$0xff]
        %128 = vst [vmem:[%s46 + $0x140] sm:$0xff] %v127
        %v129 = vld [vmem:[%s45 + $0x148] sm:$0xff]
        %130 = vst [vmem:[%s46 + $0x148] sm:$0xff] %v129
        %v131 = vld [vmem:[%s45 + $0x150] sm:$0xff]
        %132 = vst [vmem:[%s46 + $0x150] sm:$0xff] %v131
        %v133 = vld [vmem:[%s45 + $0x158] sm:$0xff]
        %134 = vst [vmem:[%s46 + $0x158] sm:$0xff] %v133
        %v135 = vld [vmem:[%s45 + $0x160] sm:$0xff]
        %136 = vst [vmem:[%s46 + $0x160] sm:$0xff] %v135
        %v137 = vld [vmem:[%s45 + $0x168] sm:$0xff]
        %138 = vst [vmem:[%s46 + $0x168] sm:$0xff] %v137
        %v139 = vld [vmem:[%s45 + $0x170] sm:$0xff]
        %140 = vst [vmem:[%s46 + $0x170] sm:$0xff] %v139
        %v141 = vld [vmem:[%s45 + $0x178] sm:$0xff]
        %142 = vst [vmem:[%s46 + $0x178] sm:$0xff] %v141
        %v143 = vld [vmem:[%s45 + $0x180] sm:$0xff]
        %144 = vst [vmem:[%s46 + $0x180] sm:$0xff] %v143
        %v145 = vld [vmem:[%s45 + $0x188] sm:$0xff]
        %146 = vst [vmem:[%s46 + $0x188] sm:$0xff] %v145
        %v147 = vld [vmem:[%s45 + $0x190] sm:$0xff]
        %148 = vst [vmem:[%s46 + $0x190] sm:$0xff] %v147
        %v149 = vld [vmem:[%s45 + $0x198] sm:$0xff]
        %150 = vst [vmem:[%s46 + $0x198] sm:$0xff] %v149
        %v151 = vld [vmem:[%s45 + $0x1a0] sm:$0xff]
        %152 = vst [vmem:[%s46 + $0x1a0] sm:$0xff] %v151
        %v153 = vld [vmem:[%s45 + $0x1a8] sm:$0xff]
        %154 = vst [vmem:[%s46 + $0x1a8] sm:$0xff] %v153
        %v155 = vld [vmem:[%s45 + $0x1b0] sm:$0xff]
        %156 = vst [vmem:[%s46 + $0x1b0] sm:$0xff] %v155
        %v157 = vld [vmem:[%s45 + $0x1b8] sm:$0xff]
        %158 = vst [vmem:[%s46 + $0x1b8] sm:$0xff] %v157
        %v159 = vld [vmem:[%s45 + $0x1c0] sm:$0xff]
        %160 = vst [vmem:[%s46 + $0x1c0] sm:$0xff] %v159
        %v161 = vld [vmem:[%s45 + $0x1c8] sm:$0xff]
        %162 = vst [vmem:[%s46 + $0x1c8] sm:$0xff] %v161
        %v163 = vld [vmem:[%s45 + $0x1d0] sm:$0xff]
        %164 = vst [vmem:[%s46 + $0x1d0] sm:$0xff] %v163
        %v165 = vld [vmem:[%s45 + $0x1d8] sm:$0xff]
        %166 = vst [vmem:[%s46 + $0x1d8] sm:$0xff] %v165
        %v167 = vld [vmem:[%s45 + $0x1e0] sm:$0xff]
        %168 = vst [vmem:[%s46 + $0x1e0] sm:$0xff] %v167
        %v169 = vld [vmem:[%s45 + $0x1e8] sm:$0xff]
        %170 = vst [vmem:[%s46 + $0x1e8] sm:$0xff] %v169
        %v171 = vld [vmem:[%s45 + $0x1f0] sm:$0xff]
        %172 = vst [vmem:[%s46 + $0x1f0] sm:$0xff] %v171
        %v173 = vld [vmem:[%s45 + $0x1f8] sm:$0xff]
        %174 = vst [vmem:[%s46 + $0x1f8] sm:$0xff] %v173
        %v175 = vld [vmem:[%s45 + $0x200] sm:$0xff]
        %176 = vst [vmem:[%s46 + $0x200] sm:$0xff] %v175
        %v177 = vld [vmem:[%s45 + $0x208] sm:$0xff]
        %178 = vst [vmem:[%s46 + $0x208] sm:$0xff] %v177
        %v179 = vld [vmem:[%s45 + $0x210] sm:$0xff]
        %180 = vst [vmem:[%s46 + $0x210] sm:$0xff] %v179
        %v181 = vld [vmem:[%s45 + $0x218] sm:$0xff]
        %182 = vst [vmem:[%s46 + $0x218] sm:$0xff] %v181
        %v183 = vld [vmem:[%s45 + $0x220] sm:$0xff]
        %184 = vst [vmem:[%s46 + $0x220] sm:$0xff] %v183
        %v185 = vld [vmem:[%s45 + $0x228] sm:$0xff]
        %186 = vst [vmem:[%s46 + $0x228] sm:$0xff] %v185
        %v187 = vld [vmem:[%s45 + $0x230] sm:$0xff]
        %188 = vst [vmem:[%s46 + $0x230] sm:$0xff] %v187
        %v189 = vld [vmem:[%s45 + $0x238] sm:$0xff]
        %190 = vst [vmem:[%s46 + $0x238] sm:$0xff] %v189
        %v191 = vld [vmem:[%s45 + $0x240] sm:$0xff]
        %192 = vst [vmem:[%s46 + $0x240] sm:$0xff] %v191
        %v193 = vld [vmem:[%s45 + $0x248] sm:$0xff]
        %194 = vst [vmem:[%s46 + $0x248] sm:$0xff] %v193
        %v195 = vld [vmem:[%s45 + $0x250] sm:$0xff]
        %196 = vst [vmem:[%s46 + $0x250] sm:$0xff] %v195
        %v197 = vld [vmem:[%s45 + $0x258] sm:$0xff]
        %198 = vst [vmem:[%s46 + $0x258] sm:$0xff] %v197
        %v199 = vld [vmem:[%s45 + $0x260] sm:$0xff]
        %200 = vst [vmem:[%s46 + $0x260] sm:$0xff] %v199
        %v201 = vld [vmem:[%s45 + $0x268] sm:$0xff]
        %202 = vst [vmem:[%s46 + $0x268] sm:$0xff] %v201
        %v203 = vld [vmem:[%s45 + $0x270] sm:$0xff]
        %204 = vst [vmem:[%s46 + $0x270] sm:$0xff] %v203
        %v205 = vld [vmem:[%s45 + $0x278] sm:$0xff]
        %206 = vst [vmem:[%s46 + $0x278] sm:$0xff] %v205
        %v207 = vld [vmem:[%s45 + $0x280] sm:$0xff]
        %208 = vst [vmem:[%s46 + $0x280] sm:$0xff] %v207
        %v209 = vld [vmem:[%s45 + $0x288] sm:$0xff]
        %210 = vst [vmem:[%s46 + $0x288] sm:$0xff] %v209
        %v211 = vld [vmem:[%s45 + $0x290] sm:$0xff]
        %212 = vst [vmem:[%s46 + $0x290] sm:$0xff] %v211
        %v213 = vld [vmem:[%s45 + $0x298] sm:$0xff]
        %214 = vst [vmem:[%s46 + $0x298] sm:$0xff] %v213
        %v215 = vld [vmem:[%s45 + $0x2a0] sm:$0xff]
        %216 = vst [vmem:[%s46 + $0x2a0] sm:$0xff] %v215
        %v217 = vld [vmem:[%s45 + $0x2a8] sm:$0xff]
        %218 = vst [vmem:[%s46 + $0x2a8] sm:$0xff] %v217
        %v219 = vld [vmem:[%s45 + $0x2b0] sm:$0xff]
        %220 = vst [vmem:[%s46 + $0x2b0] sm:$0xff] %v219
        %v221 = vld [vmem:[%s45 + $0x2b8] sm:$0xff]
        %222 = vst [vmem:[%s46 + $0x2b8] sm:$0xff] %v221
        %v223 = vld [vmem:[%s45 + $0x2c0] sm:$0xff]
        %224 = vst [vmem:[%s46 + $0x2c0] sm:$0xff] %v223
        %v225 = vld [vmem:[%s45 + $0x2c8] sm:$0xff]
        %226 = vst [vmem:[%s46 + $0x2c8] sm:$0xff] %v225
        %v227 = vld [vmem:[%s45 + $0x2d0] sm:$0xff]
        %228 = vst [vmem:[%s46 + $0x2d0] sm:$0xff] %v227
        %v229 = vld [vmem:[%s45 + $0x2d8] sm:$0xff]
        %230 = vst [vmem:[%s46 + $0x2d8] sm:$0xff] %v229
        %v231 = vld [vmem:[%s45 + $0x2e0] sm:$0xff]
        %232 = vst [vmem:[%s46 + $0x2e0] sm:$0xff] %v231
        %v233 = vld [vmem:[%s45 + $0x2e8] sm:$0xff]
        %234 = vst [vmem:[%s46 + $0x2e8] sm:$0xff] %v233
        %v235 = vld [vmem:[%s45 + $0x2f0] sm:$0xff]
        %236 = vst [vmem:[%s46 + $0x2f0] sm:$0xff] %v235
        %v237 = vld [vmem:[%s45 + $0x2f8] sm:$0xff]
        %238 = vst [vmem:[%s46 + $0x2f8] sm:$0xff] %v237
        %v239 = vld [vmem:[%s45 + $0x300] sm:$0xff]
        %240 = vst [vmem:[%s46 + $0x300] sm:$0xff] %v239
        %v241 = vld [vmem:[%s45 + $0x308] sm:$0xff]
        %242 = vst [vmem:[%s46 + $0x308] sm:$0xff] %v241
        %v243 = vld [vmem:[%s45 + $0x310] sm:$0xff]
        %244 = vst [vmem:[%s46 + $0x310] sm:$0xff] %v243
        %v245 = vld [vmem:[%s45 + $0x318] sm:$0xff]
        %246 = vst [vmem:[%s46 + $0x318] sm:$0xff] %v245
        %v247 = vld [vmem:[%s45 + $0x320] sm:$0xff]
        %248 = vst [vmem:[%s46 + $0x320] sm:$0xff] %v247
        %v249 = vld [vmem:[%s45 + $0x328] sm:$0xff]
        %250 = vst [vmem:[%s46 + $0x328] sm:$0xff] %v249
        %v251 = vld [vmem:[%s45 + $0x330] sm:$0xff]
        %252 = vst [vmem:[%s46 + $0x330] sm:$0xff] %v251
        %v253 = vld [vmem:[%s45 + $0x338] sm:$0xff]
        %254 = vst [vmem:[%s46 + $0x338] sm:$0xff] %v253
        %v255 = vld [vmem:[%s45 + $0x340] sm:$0xff]
        %256 = vst [vmem:[%s46 + $0x340] sm:$0xff] %v255
        %v257 = vld [vmem:[%s45 + $0x348] sm:$0xff]
        %258 = vst [vmem:[%s46 + $0x348] sm:$0xff] %v257
        %v259 = vld [vmem:[%s45 + $0x350] sm:$0xff]
        %260 = vst [vmem:[%s46 + $0x350] sm:$0xff] %v259
        %v261 = vld [vmem:[%s45 + $0x358] sm:$0xff]
        %262 = vst [vmem:[%s46 + $0x358] sm:$0xff] %v261
        %v263 = vld [vmem:[%s45 + $0x360] sm:$0xff]
        %264 = vst [vmem:[%s46 + $0x360] sm:$0xff] %v263
        %v265 = vld [vmem:[%s45 + $0x368] sm:$0xff]
        %266 = vst [vmem:[%s46 + $0x368] sm:$0xff] %v265
        %v267 = vld [vmem:[%s45 + $0x370] sm:$0xff]
        %268 = vst [vmem:[%s46 + $0x370] sm:$0xff] %v267
        %v269 = vld [vmem:[%s45 + $0x378] sm:$0xff]
        %270 = vst [vmem:[%s46 + $0x378] sm:$0xff] %v269
        %v271 = vld [vmem:[%s45 + $0x380] sm:$0xff]
        %272 = vst [vmem:[%s46 + $0x380] sm:$0xff] %v271
        %v273 = vld [vmem:[%s45 + $0x388] sm:$0xff]
        %274 = vst [vmem:[%s46 + $0x388] sm:$0xff] %v273
        %v275 = vld [vmem:[%s45 + $0x390] sm:$0xff]
        %276 = vst [vmem:[%s46 + $0x390] sm:$0xff] %v275
        %v277 = vld [vmem:[%s45 + $0x398] sm:$0xff]
        %278 = vst [vmem:[%s46 + $0x398] sm:$0xff] %v277
        %v279 = vld [vmem:[%s45 + $0x3a0] sm:$0xff]
        %280 = vst [vmem:[%s46 + $0x3a0] sm:$0xff] %v279
        %v281 = vld [vmem:[%s45 + $0x3a8] sm:$0xff]
        %282 = vst [vmem:[%s46 + $0x3a8] sm:$0xff] %v281
        %v283 = vld [vmem:[%s45 + $0x3b0] sm:$0xff]
        %284 = vst [vmem:[%s46 + $0x3b0] sm:$0xff] %v283
        %v285 = vld [vmem:[%s45 + $0x3b8] sm:$0xff]
        %286 = vst [vmem:[%s46 + $0x3b8] sm:$0xff] %v285
        %v287 = vld [vmem:[%s45 + $0x3c0] sm:$0xff]
        %288 = vst [vmem:[%s46 + $0x3c0] sm:$0xff] %v287
        %v289 = vld [vmem:[%s45 + $0x3c8] sm:$0xff]
        %290 = vst [vmem:[%s46 + $0x3c8] sm:$0xff] %v289
        %v291 = vld [vmem:[%s45 + $0x3d0] sm:$0xff]
        %292 = vst [vmem:[%s46 + $0x3d0] sm:$0xff] %v291
        %v293 = vld [vmem:[%s45 + $0x3d8] sm:$0xff]
        %294 = vst [vmem:[%s46 + $0x3d8] sm:$0xff] %v293
        %v295 = vld [vmem:[%s45 + $0x3e0] sm:$0xff]
        %296 = vst [vmem:[%s46 + $0x3e0] sm:$0xff] %v295
      $region25: #{tpu_custom_call.1} parent=19 // loop_footer
        %s44 = sadd.s32 1, %s40
      $region26: #{tpu_custom_call.1} parent=19 // loop_footer_branch
        %39 = sbr.rel target = $region22
      $region27: #{tpu_custom_call.1} parent=19 // loop_exit
        _
    $region20: #{tpu_custom_call.1} parent=4 // pred_fallthru
      _
    %p297 = pneg %p35
    // Predicated region
    $region28: #{tpu_custom_call.1} parent=4 // pred_check
      _
    $region29: #{tpu_custom_call.1} parent=4 // pred_check_branch
      %299 = sbr.rel (%p35) target = $region31
    $region30: #{tpu_custom_call.1} parent=4 // pred_region
      %s300 = sand.u32 1000, 7
    $region31: #{tpu_custom_call.1} parent=4 // pred_fallthru
      _
  $region5: #{tpu_custom_call.1} parent=0 // pred_fallthru
    _
  // Predicated region
  $region6: #{tpu_custom_call.1} parent=0 // pred_check
    %p20 = pneg %p16
  $region7: #{tpu_custom_call.1} parent=0 // pred_check_branch
    %22 = sbr.rel (%p20) target = $region9
  $region8: #{tpu_custom_call.1} parent=0 // pred_region
    %s23 = sshllo.u32 0, 1000
    loop: start=0, step=1, limit=1
    $region10: #{tpu_custom_call.1} parent=8 // loop_pre_header
      _
    $region11: #{tpu_custom_call.1} parent=8 // loop_header
      %s25 = sphi 0, %s29
      %p26 = scmp.ge.s32.totalorder %s25, 1
      %s30 = sphi %s0, %s0
      %s31 = sphi %s5, %s5
    $region12: #{tpu_custom_call.1} parent=8 // loop_header_branch
      %28 = sbr.rel (%p26) target = $region16
    $region13: #{tpu_custom_call.1} parent=8 // loop_body
      %v32 = vld [vmem:[%s30] sm:%s23]
      %33 = vst [vmem:[%s31] sm:%s23] %v32
    $region14: #{tpu_custom_call.1} parent=8 // loop_footer
      %s29 = sadd.s32 1, %s25
    $region15: #{tpu_custom_call.1} parent=8 // loop_footer_branch
      %24 = sbr.rel target = $region11
    $region16: #{tpu_custom_call.1} parent=8 // loop_exit
      _
  $region9: #{tpu_custom_call.1} parent=0 // pred_fallthru
    _
  // Predicated region
  $region32: #{tpu_custom_call.1} parent=0 // pred_check
    _
  $region33: #{tpu_custom_call.1} parent=0 // pred_check_branch
    %303 = sbr.rel (0) target = $region35
  $region34: #{tpu_custom_call.1} parent=0 // pred_region
    %304 = vsyncadd [#allocation2], 16000
  $region35: #{tpu_custom_call.1} parent=0 // pred_fallthru
    _
  %s305 = scalar_lea.sflag [#allocation2], 1
  %p307 = scmp.lt.u32.totalorder 1000, 8
  %p308 = pneg %p307
  // Predicated region
  $region36: #{tpu_custom_call.1} parent=0 // pred_check
    _
  $region37: #{tpu_custom_call.1} parent=0 // pred_check_branch
    %310 = sbr.rel (%p307) target = $region39
  $region38: #{tpu_custom_call.1} parent=0 // pred_region
    %s325 = sand.u32 1000, 7
    %p326 = scmp.eq.s32.totalorder %s325, 0
    // Predicated region
    $region51: #{tpu_custom_call.1} parent=38 // pred_check
      %p327 = pneg %p326
    $region52: #{tpu_custom_call.1} parent=38 // pred_check_branch
      %329 = sbr.rel (%p327) target = $region54
    $region53: #{tpu_custom_call.1} parent=38 // pred_region
      loop: start=0, step=1, limit=1
      $region55: #{tpu_custom_call.1} parent=53 // loop_pre_header
        _
      $region56: #{tpu_custom_call.1} parent=53 // loop_header
        %s331 = sphi 0, %s335
        %p332 = scmp.ge.s32.totalorder %s331, 1
        %s336 = sphi %s1, %s1
        %s337 = sphi %s6, %s6
      $region57: #{tpu_custom_call.1} parent=53 // loop_header_branch
        %334 = sbr.rel (%p332) target = $region61
      $region58: #{tpu_custom_call.1} parent=53 // loop_body
        %v338 = vld [vmem:[%s336] sm:$0xff]
        %339 = vst [vmem:[%s337] sm:$0xff] %v338
        %v340 = vld [vmem:[%s336 + $0x8] sm:$0xff]
        %341 = vst [vmem:[%s337 + $0x8] sm:$0xff] %v340
        %v342 = vld [vmem:[%s336 + $0x10] sm:$0xff]
        %343 = vst [vmem:[%s337 + $0x10] sm:$0xff] %v342
        %v344 = vld [vmem:[%s336 + $0x18] sm:$0xff]
        %345 = vst [vmem:[%s337 + $0x18] sm:$0xff] %v344
        %v346 = vld [vmem:[%s336 + $0x20] sm:$0xff]
        %347 = vst [vmem:[%s337 + $0x20] sm:$0xff] %v346
        %v348 = vld [vmem:[%s336 + $0x28] sm:$0xff]
        %349 = vst [vmem:[%s337 + $0x28] sm:$0xff] %v348
        %v350 = vld [vmem:[%s336 + $0x30] sm:$0xff]
        %351 = vst [vmem:[%s337 + $0x30] sm:$0xff] %v350
        %v352 = vld [vmem:[%s336 + $0x38] sm:$0xff]
        %353 = vst [vmem:[%s337 + $0x38] sm:$0xff] %v352
        %v354 = vld [vmem:[%s336 + $0x40] sm:$0xff]
        %355 = vst [vmem:[%s337 + $0x40] sm:$0xff] %v354
        %v356 = vld [vmem:[%s336 + $0x48] sm:$0xff]
        %357 = vst [vmem:[%s337 + $0x48] sm:$0xff] %v356
        %v358 = vld [vmem:[%s336 + $0x50] sm:$0xff]
        %359 = vst [vmem:[%s337 + $0x50] sm:$0xff] %v358
        %v360 = vld [vmem:[%s336 + $0x58] sm:$0xff]
        %361 = vst [vmem:[%s337 + $0x58] sm:$0xff] %v360
        %v362 = vld [vmem:[%s336 + $0x60] sm:$0xff]
        %363 = vst [vmem:[%s337 + $0x60] sm:$0xff] %v362
        %v364 = vld [vmem:[%s336 + $0x68] sm:$0xff]
        %365 = vst [vmem:[%s337 + $0x68] sm:$0xff] %v364
        %v366 = vld [vmem:[%s336 + $0x70] sm:$0xff]
        %367 = vst [vmem:[%s337 + $0x70] sm:$0xff] %v366
        %v368 = vld [vmem:[%s336 + $0x78] sm:$0xff]
        %369 = vst [vmem:[%s337 + $0x78] sm:$0xff] %v368
        %v370 = vld [vmem:[%s336 + $0x80] sm:$0xff]
        %371 = vst [vmem:[%s337 + $0x80] sm:$0xff] %v370
        %v372 = vld [vmem:[%s336 + $0x88] sm:$0xff]
        %373 = vst [vmem:[%s337 + $0x88] sm:$0xff] %v372
        %v374 = vld [vmem:[%s336 + $0x90] sm:$0xff]
        %375 = vst [vmem:[%s337 + $0x90] sm:$0xff] %v374
        %v376 = vld [vmem:[%s336 + $0x98] sm:$0xff]
        %377 = vst [vmem:[%s337 + $0x98] sm:$0xff] %v376
        %v378 = vld [vmem:[%s336 + $0xa0] sm:$0xff]
        %379 = vst [vmem:[%s337 + $0xa0] sm:$0xff] %v378
        %v380 = vld [vmem:[%s336 + $0xa8] sm:$0xff]
        %381 = vst [vmem:[%s337 + $0xa8] sm:$0xff] %v380
        %v382 = vld [vmem:[%s336 + $0xb0] sm:$0xff]
        %383 = vst [vmem:[%s337 + $0xb0] sm:$0xff] %v382
        %v384 = vld [vmem:[%s336 + $0xb8] sm:$0xff]
        %385 = vst [vmem:[%s337 + $0xb8] sm:$0xff] %v384
        %v386 = vld [vmem:[%s336 + $0xc0] sm:$0xff]
        %387 = vst [vmem:[%s337 + $0xc0] sm:$0xff] %v386
        %v388 = vld [vmem:[%s336 + $0xc8] sm:$0xff]
        %389 = vst [vmem:[%s337 + $0xc8] sm:$0xff] %v388
        %v390 = vld [vmem:[%s336 + $0xd0] sm:$0xff]
        %391 = vst [vmem:[%s337 + $0xd0] sm:$0xff] %v390
        %v392 = vld [vmem:[%s336 + $0xd8] sm:$0xff]
        %393 = vst [vmem:[%s337 + $0xd8] sm:$0xff] %v392
        %v394 = vld [vmem:[%s336 + $0xe0] sm:$0xff]
        %395 = vst [vmem:[%s337 + $0xe0] sm:$0xff] %v394
        %v396 = vld [vmem:[%s336 + $0xe8] sm:$0xff]
        %397 = vst [vmem:[%s337 + $0xe8] sm:$0xff] %v396
        %v398 = vld [vmem:[%s336 + $0xf0] sm:$0xff]
        %399 = vst [vmem:[%s337 + $0xf0] sm:$0xff] %v398
        %v400 = vld [vmem:[%s336 + $0xf8] sm:$0xff]
        %401 = vst [vmem:[%s337 + $0xf8] sm:$0xff] %v400
        %v402 = vld [vmem:[%s336 + $0x100] sm:$0xff]
        %403 = vst [vmem:[%s337 + $0x100] sm:$0xff] %v402
        %v404 = vld [vmem:[%s336 + $0x108] sm:$0xff]
        %405 = vst [vmem:[%s337 + $0x108] sm:$0xff] %v404
        %v406 = vld [vmem:[%s336 + $0x110] sm:$0xff]
        %407 = vst [vmem:[%s337 + $0x110] sm:$0xff] %v406
        %v408 = vld [vmem:[%s336 + $0x118] sm:$0xff]
        %409 = vst [vmem:[%s337 + $0x118] sm:$0xff] %v408
        %v410 = vld [vmem:[%s336 + $0x120] sm:$0xff]
        %411 = vst [vmem:[%s337 + $0x120] sm:$0xff] %v410
        %v412 = vld [vmem:[%s336 + $0x128] sm:$0xff]
        %413 = vst [vmem:[%s337 + $0x128] sm:$0xff] %v412
        %v414 = vld [vmem:[%s336 + $0x130] sm:$0xff]
        %415 = vst [vmem:[%s337 + $0x130] sm:$0xff] %v414
        %v416 = vld [vmem:[%s336 + $0x138] sm:$0xff]
        %417 = vst [vmem:[%s337 + $0x138] sm:$0xff] %v416
        %v418 = vld [vmem:[%s336 + $0x140] sm:$0xff]
        %419 = vst [vmem:[%s337 + $0x140] sm:$0xff] %v418
        %v420 = vld [vmem:[%s336 + $0x148] sm:$0xff]
        %421 = vst [vmem:[%s337 + $0x148] sm:$0xff] %v420
        %v422 = vld [vmem:[%s336 + $0x150] sm:$0xff]
        %423 = vst [vmem:[%s337 + $0x150] sm:$0xff] %v422
        %v424 = vld [vmem:[%s336 + $0x158] sm:$0xff]
        %425 = vst [vmem:[%s337 + $0x158] sm:$0xff] %v424
        %v426 = vld [vmem:[%s336 + $0x160] sm:$0xff]
        %427 = vst [vmem:[%s337 + $0x160] sm:$0xff] %v426
        %v428 = vld [vmem:[%s336 + $0x168] sm:$0xff]
        %429 = vst [vmem:[%s337 + $0x168] sm:$0xff] %v428
        %v430 = vld [vmem:[%s336 + $0x170] sm:$0xff]
        %431 = vst [vmem:[%s337 + $0x170] sm:$0xff] %v430
        %v432 = vld [vmem:[%s336 + $0x178] sm:$0xff]
        %433 = vst [vmem:[%s337 + $0x178] sm:$0xff] %v432
        %v434 = vld [vmem:[%s336 + $0x180] sm:$0xff]
        %435 = vst [vmem:[%s337 + $0x180] sm:$0xff] %v434
        %v436 = vld [vmem:[%s336 + $0x188] sm:$0xff]
        %437 = vst [vmem:[%s337 + $0x188] sm:$0xff] %v436
        %v438 = vld [vmem:[%s336 + $0x190] sm:$0xff]
        %439 = vst [vmem:[%s337 + $0x190] sm:$0xff] %v438
        %v440 = vld [vmem:[%s336 + $0x198] sm:$0xff]
        %441 = vst [vmem:[%s337 + $0x198] sm:$0xff] %v440
        %v442 = vld [vmem:[%s336 + $0x1a0] sm:$0xff]
        %443 = vst [vmem:[%s337 + $0x1a0] sm:$0xff] %v442
        %v444 = vld [vmem:[%s336 + $0x1a8] sm:$0xff]
        %445 = vst [vmem:[%s337 + $0x1a8] sm:$0xff] %v444
        %v446 = vld [vmem:[%s336 + $0x1b0] sm:$0xff]
        %447 = vst [vmem:[%s337 + $0x1b0] sm:$0xff] %v446
        %v448 = vld [vmem:[%s336 + $0x1b8] sm:$0xff]
        %449 = vst [vmem:[%s337 + $0x1b8] sm:$0xff] %v448
        %v450 = vld [vmem:[%s336 + $0x1c0] sm:$0xff]
        %451 = vst [vmem:[%s337 + $0x1c0] sm:$0xff] %v450
        %v452 = vld [vmem:[%s336 + $0x1c8] sm:$0xff]
        %453 = vst [vmem:[%s337 + $0x1c8] sm:$0xff] %v452
        %v454 = vld [vmem:[%s336 + $0x1d0] sm:$0xff]
        %455 = vst [vmem:[%s337 + $0x1d0] sm:$0xff] %v454
        %v456 = vld [vmem:[%s336 + $0x1d8] sm:$0xff]
        %457 = vst [vmem:[%s337 + $0x1d8] sm:$0xff] %v456
        %v458 = vld [vmem:[%s336 + $0x1e0] sm:$0xff]
        %459 = vst [vmem:[%s337 + $0x1e0] sm:$0xff] %v458
        %v460 = vld [vmem:[%s336 + $0x1e8] sm:$0xff]
        %461 = vst [vmem:[%s337 + $0x1e8] sm:$0xff] %v460
        %v462 = vld [vmem:[%s336 + $0x1f0] sm:$0xff]
        %463 = vst [vmem:[%s337 + $0x1f0] sm:$0xff] %v462
        %v464 = vld [vmem:[%s336 + $0x1f8] sm:$0xff]
        %465 = vst [vmem:[%s337 + $0x1f8] sm:$0xff] %v464
        %v466 = vld [vmem:[%s336 + $0x200] sm:$0xff]
        %467 = vst [vmem:[%s337 + $0x200] sm:$0xff] %v466
        %v468 = vld [vmem:[%s336 + $0x208] sm:$0xff]
        %469 = vst [vmem:[%s337 + $0x208] sm:$0xff] %v468
        %v470 = vld [vmem:[%s336 + $0x210] sm:$0xff]
        %471 = vst [vmem:[%s337 + $0x210] sm:$0xff] %v470
        %v472 = vld [vmem:[%s336 + $0x218] sm:$0xff]
        %473 = vst [vmem:[%s337 + $0x218] sm:$0xff] %v472
        %v474 = vld [vmem:[%s336 + $0x220] sm:$0xff]
        %475 = vst [vmem:[%s337 + $0x220] sm:$0xff] %v474
        %v476 = vld [vmem:[%s336 + $0x228] sm:$0xff]
        %477 = vst [vmem:[%s337 + $0x228] sm:$0xff] %v476
        %v478 = vld [vmem:[%s336 + $0x230] sm:$0xff]
        %479 = vst [vmem:[%s337 + $0x230] sm:$0xff] %v478
        %v480 = vld [vmem:[%s336 + $0x238] sm:$0xff]
        %481 = vst [vmem:[%s337 + $0x238] sm:$0xff] %v480
        %v482 = vld [vmem:[%s336 + $0x240] sm:$0xff]
        %483 = vst [vmem:[%s337 + $0x240] sm:$0xff] %v482
        %v484 = vld [vmem:[%s336 + $0x248] sm:$0xff]
        %485 = vst [vmem:[%s337 + $0x248] sm:$0xff] %v484
        %v486 = vld [vmem:[%s336 + $0x250] sm:$0xff]
        %487 = vst [vmem:[%s337 + $0x250] sm:$0xff] %v486
        %v488 = vld [vmem:[%s336 + $0x258] sm:$0xff]
        %489 = vst [vmem:[%s337 + $0x258] sm:$0xff] %v488
        %v490 = vld [vmem:[%s336 + $0x260] sm:$0xff]
        %491 = vst [vmem:[%s337 + $0x260] sm:$0xff] %v490
        %v492 = vld [vmem:[%s336 + $0x268] sm:$0xff]
        %493 = vst [vmem:[%s337 + $0x268] sm:$0xff] %v492
        %v494 = vld [vmem:[%s336 + $0x270] sm:$0xff]
        %495 = vst [vmem:[%s337 + $0x270] sm:$0xff] %v494
        %v496 = vld [vmem:[%s336 + $0x278] sm:$0xff]
        %497 = vst [vmem:[%s337 + $0x278] sm:$0xff] %v496
        %v498 = vld [vmem:[%s336 + $0x280] sm:$0xff]
        %499 = vst [vmem:[%s337 + $0x280] sm:$0xff] %v498
        %v500 = vld [vmem:[%s336 + $0x288] sm:$0xff]
        %501 = vst [vmem:[%s337 + $0x288] sm:$0xff] %v500
        %v502 = vld [vmem:[%s336 + $0x290] sm:$0xff]
        %503 = vst [vmem:[%s337 + $0x290] sm:$0xff] %v502
        %v504 = vld [vmem:[%s336 + $0x298] sm:$0xff]
        %505 = vst [vmem:[%s337 + $0x298] sm:$0xff] %v504
        %v506 = vld [vmem:[%s336 + $0x2a0] sm:$0xff]
        %507 = vst [vmem:[%s337 + $0x2a0] sm:$0xff] %v506
        %v508 = vld [vmem:[%s336 + $0x2a8] sm:$0xff]
        %509 = vst [vmem:[%s337 + $0x2a8] sm:$0xff] %v508
        %v510 = vld [vmem:[%s336 + $0x2b0] sm:$0xff]
        %511 = vst [vmem:[%s337 + $0x2b0] sm:$0xff] %v510
        %v512 = vld [vmem:[%s336 + $0x2b8] sm:$0xff]
        %513 = vst [vmem:[%s337 + $0x2b8] sm:$0xff] %v512
        %v514 = vld [vmem:[%s336 + $0x2c0] sm:$0xff]
        %515 = vst [vmem:[%s337 + $0x2c0] sm:$0xff] %v514
        %v516 = vld [vmem:[%s336 + $0x2c8] sm:$0xff]
        %517 = vst [vmem:[%s337 + $0x2c8] sm:$0xff] %v516
        %v518 = vld [vmem:[%s336 + $0x2d0] sm:$0xff]
        %519 = vst [vmem:[%s337 + $0x2d0] sm:$0xff] %v518
        %v520 = vld [vmem:[%s336 + $0x2d8] sm:$0xff]
        %521 = vst [vmem:[%s337 + $0x2d8] sm:$0xff] %v520
        %v522 = vld [vmem:[%s336 + $0x2e0] sm:$0xff]
        %523 = vst [vmem:[%s337 + $0x2e0] sm:$0xff] %v522
        %v524 = vld [vmem:[%s336 + $0x2e8] sm:$0xff]
        %525 = vst [vmem:[%s337 + $0x2e8] sm:$0xff] %v524
        %v526 = vld [vmem:[%s336 + $0x2f0] sm:$0xff]
        %527 = vst [vmem:[%s337 + $0x2f0] sm:$0xff] %v526
        %v528 = vld [vmem:[%s336 + $0x2f8] sm:$0xff]
        %529 = vst [vmem:[%s337 + $0x2f8] sm:$0xff] %v528
        %v530 = vld [vmem:[%s336 + $0x300] sm:$0xff]
        %531 = vst [vmem:[%s337 + $0x300] sm:$0xff] %v530
        %v532 = vld [vmem:[%s336 + $0x308] sm:$0xff]
        %533 = vst [vmem:[%s337 + $0x308] sm:$0xff] %v532
        %v534 = vld [vmem:[%s336 + $0x310] sm:$0xff]
        %535 = vst [vmem:[%s337 + $0x310] sm:$0xff] %v534
        %v536 = vld [vmem:[%s336 + $0x318] sm:$0xff]
        %537 = vst [vmem:[%s337 + $0x318] sm:$0xff] %v536
        %v538 = vld [vmem:[%s336 + $0x320] sm:$0xff]
        %539 = vst [vmem:[%s337 + $0x320] sm:$0xff] %v538
        %v540 = vld [vmem:[%s336 + $0x328] sm:$0xff]
        %541 = vst [vmem:[%s337 + $0x328] sm:$0xff] %v540
        %v542 = vld [vmem:[%s336 + $0x330] sm:$0xff]
        %543 = vst [vmem:[%s337 + $0x330] sm:$0xff] %v542
        %v544 = vld [vmem:[%s336 + $0x338] sm:$0xff]
        %545 = vst [vmem:[%s337 + $0x338] sm:$0xff] %v544
        %v546 = vld [vmem:[%s336 + $0x340] sm:$0xff]
        %547 = vst [vmem:[%s337 + $0x340] sm:$0xff] %v546
        %v548 = vld [vmem:[%s336 + $0x348] sm:$0xff]
        %549 = vst [vmem:[%s337 + $0x348] sm:$0xff] %v548
        %v550 = vld [vmem:[%s336 + $0x350] sm:$0xff]
        %551 = vst [vmem:[%s337 + $0x350] sm:$0xff] %v550
        %v552 = vld [vmem:[%s336 + $0x358] sm:$0xff]
        %553 = vst [vmem:[%s337 + $0x358] sm:$0xff] %v552
        %v554 = vld [vmem:[%s336 + $0x360] sm:$0xff]
        %555 = vst [vmem:[%s337 + $0x360] sm:$0xff] %v554
        %v556 = vld [vmem:[%s336 + $0x368] sm:$0xff]
        %557 = vst [vmem:[%s337 + $0x368] sm:$0xff] %v556
        %v558 = vld [vmem:[%s336 + $0x370] sm:$0xff]
        %559 = vst [vmem:[%s337 + $0x370] sm:$0xff] %v558
        %v560 = vld [vmem:[%s336 + $0x378] sm:$0xff]
        %561 = vst [vmem:[%s337 + $0x378] sm:$0xff] %v560
        %v562 = vld [vmem:[%s336 + $0x380] sm:$0xff]
        %563 = vst [vmem:[%s337 + $0x380] sm:$0xff] %v562
        %v564 = vld [vmem:[%s336 + $0x388] sm:$0xff]
        %565 = vst [vmem:[%s337 + $0x388] sm:$0xff] %v564
        %v566 = vld [vmem:[%s336 + $0x390] sm:$0xff]
        %567 = vst [vmem:[%s337 + $0x390] sm:$0xff] %v566
        %v568 = vld [vmem:[%s336 + $0x398] sm:$0xff]
        %569 = vst [vmem:[%s337 + $0x398] sm:$0xff] %v568
        %v570 = vld [vmem:[%s336 + $0x3a0] sm:$0xff]
        %571 = vst [vmem:[%s337 + $0x3a0] sm:$0xff] %v570
        %v572 = vld [vmem:[%s336 + $0x3a8] sm:$0xff]
        %573 = vst [vmem:[%s337 + $0x3a8] sm:$0xff] %v572
        %v574 = vld [vmem:[%s336 + $0x3b0] sm:$0xff]
        %575 = vst [vmem:[%s337 + $0x3b0] sm:$0xff] %v574
        %v576 = vld [vmem:[%s336 + $0x3b8] sm:$0xff]
        %577 = vst [vmem:[%s337 + $0x3b8] sm:$0xff] %v576
        %v578 = vld [vmem:[%s336 + $0x3c0] sm:$0xff]
        %579 = vst [vmem:[%s337 + $0x3c0] sm:$0xff] %v578
        %v580 = vld [vmem:[%s336 + $0x3c8] sm:$0xff]
        %581 = vst [vmem:[%s337 + $0x3c8] sm:$0xff] %v580
        %v582 = vld [vmem:[%s336 + $0x3d0] sm:$0xff]
        %583 = vst [vmem:[%s337 + $0x3d0] sm:$0xff] %v582
        %v584 = vld [vmem:[%s336 + $0x3d8] sm:$0xff]
        %585 = vst [vmem:[%s337 + $0x3d8] sm:$0xff] %v584
        %v586 = vld [vmem:[%s336 + $0x3e0] sm:$0xff]
        %587 = vst [vmem:[%s337 + $0x3e0] sm:$0xff] %v586
      $region59: #{tpu_custom_call.1} parent=53 // loop_footer
        %s335 = sadd.s32 1, %s331
      $region60: #{tpu_custom_call.1} parent=53 // loop_footer_branch
        %330 = sbr.rel target = $region56
      $region61: #{tpu_custom_call.1} parent=53 // loop_exit
        _
    $region54: #{tpu_custom_call.1} parent=38 // pred_fallthru
      _
    %p588 = pneg %p326
    // Predicated region
    $region62: #{tpu_custom_call.1} parent=38 // pred_check
      _
    $region63: #{tpu_custom_call.1} parent=38 // pred_check_branch
      %590 = sbr.rel (%p326) target = $region65
    $region64: #{tpu_custom_call.1} parent=38 // pred_region
      %s591 = sand.u32 1000, 7
    $region65: #{tpu_custom_call.1} parent=38 // pred_fallthru
      _
  $region39: #{tpu_custom_call.1} parent=0 // pred_fallthru
    _
  // Predicated region
  $region40: #{tpu_custom_call.1} parent=0 // pred_check
    %p311 = pneg %p307
  $region41: #{tpu_custom_call.1} parent=0 // pred_check_branch
    %313 = sbr.rel (%p311) target = $region43
  $region42: #{tpu_custom_call.1} parent=0 // pred_region
    %s314 = sshllo.u32 0, 1000
    loop: start=0, step=1, limit=1
    $region44: #{tpu_custom_call.1} parent=42 // loop_pre_header
      _
    $region45: #{tpu_custom_call.1} parent=42 // loop_header
      %s316 = sphi 0, %s320
      %p317 = scmp.ge.s32.totalorder %s316, 1
      %s321 = sphi %s1, %s1
      %s322 = sphi %s6, %s6
    $region46: #{tpu_custom_call.1} parent=42 // loop_header_branch
      %319 = sbr.rel (%p317) target = $region50
    $region47: #{tpu_custom_call.1} parent=42 // loop_body
      %v323 = vld [vmem:[%s321] sm:%s314]
      %324 = vst [vmem:[%s322] sm:%s314] %v323
    $region48: #{tpu_custom_call.1} parent=42 // loop_footer
      %s320 = sadd.s32 1, %s316
    $region49: #{tpu_custom_call.1} parent=42 // loop_footer_branch
      %315 = sbr.rel target = $region45
    $region50: #{tpu_custom_call.1} parent=42 // loop_exit
      _
  $region43: #{tpu_custom_call.1} parent=0 // pred_fallthru
    _
  // Predicated region
  $region66: #{tpu_custom_call.1} parent=0 // pred_check
    _
  $region67: #{tpu_custom_call.1} parent=0 // pred_check_branch
    %594 = sbr.rel (0) target = $region69
  $region68: #{tpu_custom_call.1} parent=0 // pred_region
    %595 = vsyncadd %s305, 16000
  $region69: #{tpu_custom_call.1} parent=0 // pred_fallthru
    _
  %s596 = scalar_lea.sflag [#allocation2], 2
  %p598 = scmp.lt.u32.totalorder 1000, 8
  %p599 = pneg %p598
  // Predicated region
  $region70: #{tpu_custom_call.1} parent=0 // pred_check
    _
  $region71: #{tpu_custom_call.1} parent=0 // pred_check_branch
    %601 = sbr.rel (%p598) target = $region73
  $region72: #{tpu_custom_call.1} parent=0 // pred_region
    %s616 = sand.u32 1000, 7
    %p617 = scmp.eq.s32.totalorder %s616, 0
    // Predicated region
    $region85: #{tpu_custom_call.1} parent=72 // pred_check
      %p618 = pneg %p617
    $region86: #{tpu_custom_call.1} parent=72 // pred_check_branch
      %620 = sbr.rel (%p618) target = $region88
    $region87: #{tpu_custom_call.1} parent=72 // pred_region
      loop: start=0, step=1, limit=1
      $region89: #{tpu_custom_call.1} parent=87 // loop_pre_header
        _
      $region90: #{tpu_custom_call.1} parent=87 // loop_header
        %s622 = sphi 0, %s626
        %p623 = scmp.ge.s32.totalorder %s622, 1
        %s627 = sphi %s2, %s2
        %s628 = sphi %s7, %s7
      $region91: #{tpu_custom_call.1} parent=87 // loop_header_branch
        %625 = sbr.rel (%p623) target = $region95
      $region92: #{tpu_custom_call.1} parent=87 // loop_body
        %v629 = vld [vmem:[%s627] sm:$0xff]
        %630 = vst [vmem:[%s628] sm:$0xff] %v629
        %v631 = vld [vmem:[%s627 + $0x8] sm:$0xff]
        %632 = vst [vmem:[%s628 + $0x8] sm:$0xff] %v631
        %v633 = vld [vmem:[%s627 + $0x10] sm:$0xff]
        %634 = vst [vmem:[%s628 + $0x10] sm:$0xff] %v633
        %v635 = vld [vmem:[%s627 + $0x18] sm:$0xff]
        %636 = vst [vmem:[%s628 + $0x18] sm:$0xff] %v635
        %v637 = vld [vmem:[%s627 + $0x20] sm:$0xff]
        %638 = vst [vmem:[%s628 + $0x20] sm:$0xff] %v637
        %v639 = vld [vmem:[%s627 + $0x28] sm:$0xff]
        %640 = vst [vmem:[%s628 + $0x28] sm:$0xff] %v639
        %v641 = vld [vmem:[%s627 + $0x30] sm:$0xff]
        %642 = vst [vmem:[%s628 + $0x30] sm:$0xff] %v641
        %v643 = vld [vmem:[%s627 + $0x38] sm:$0xff]
        %644 = vst [vmem:[%s628 + $0x38] sm:$0xff] %v643
        %v645 = vld [vmem:[%s627 + $0x40] sm:$0xff]
        %646 = vst [vmem:[%s628 + $0x40] sm:$0xff] %v645
        %v647 = vld [vmem:[%s627 + $0x48] sm:$0xff]
        %648 = vst [vmem:[%s628 + $0x48] sm:$0xff] %v647
        %v649 = vld [vmem:[%s627 + $0x50] sm:$0xff]
        %650 = vst [vmem:[%s628 + $0x50] sm:$0xff] %v649
        %v651 = vld [vmem:[%s627 + $0x58] sm:$0xff]
        %652 = vst [vmem:[%s628 + $0x58] sm:$0xff] %v651
        %v653 = vld [vmem:[%s627 + $0x60] sm:$0xff]
        %654 = vst [vmem:[%s628 + $0x60] sm:$0xff] %v653
        %v655 = vld [vmem:[%s627 + $0x68] sm:$0xff]
        %656 = vst [vmem:[%s628 + $0x68] sm:$0xff] %v655
        %v657 = vld [vmem:[%s627 + $0x70] sm:$0xff]
        %658 = vst [vmem:[%s628 + $0x70] sm:$0xff] %v657
        %v659 = vld [vmem:[%s627 + $0x78] sm:$0xff]
        %660 = vst [vmem:[%s628 + $0x78] sm:$0xff] %v659
        %v661 = vld [vmem:[%s627 + $0x80] sm:$0xff]
        %662 = vst [vmem:[%s628 + $0x80] sm:$0xff] %v661
        %v663 = vld [vmem:[%s627 + $0x88] sm:$0xff]
        %664 = vst [vmem:[%s628 + $0x88] sm:$0xff] %v663
        %v665 = vld [vmem:[%s627 + $0x90] sm:$0xff]
        %666 = vst [vmem:[%s628 + $0x90] sm:$0xff] %v665
        %v667 = vld [vmem:[%s627 + $0x98] sm:$0xff]
        %668 = vst [vmem:[%s628 + $0x98] sm:$0xff] %v667
        %v669 = vld [vmem:[%s627 + $0xa0] sm:$0xff]
        %670 = vst [vmem:[%s628 + $0xa0] sm:$0xff] %v669
        %v671 = vld [vmem:[%s627 + $0xa8] sm:$0xff]
        %672 = vst [vmem:[%s628 + $0xa8] sm:$0xff] %v671
        %v673 = vld [vmem:[%s627 + $0xb0] sm:$0xff]
        %674 = vst [vmem:[%s628 + $0xb0] sm:$0xff] %v673
        %v675 = vld [vmem:[%s627 + $0xb8] sm:$0xff]
        %676 = vst [vmem:[%s628 + $0xb8] sm:$0xff] %v675
        %v677 = vld [vmem:[%s627 + $0xc0] sm:$0xff]
        %678 = vst [vmem:[%s628 + $0xc0] sm:$0xff] %v677
        %v679 = vld [vmem:[%s627 + $0xc8] sm:$0xff]
        %680 = vst [vmem:[%s628 + $0xc8] sm:$0xff] %v679
        %v681 = vld [vmem:[%s627 + $0xd0] sm:$0xff]
        %682 = vst [vmem:[%s628 + $0xd0] sm:$0xff] %v681
        %v683 = vld [vmem:[%s627 + $0xd8] sm:$0xff]
        %684 = vst [vmem:[%s628 + $0xd8] sm:$0xff] %v683
        %v685 = vld [vmem:[%s627 + $0xe0] sm:$0xff]
        %686 = vst [vmem:[%s628 + $0xe0] sm:$0xff] %v685
        %v687 = vld [vmem:[%s627 + $0xe8] sm:$0xff]
        %688 = vst [vmem:[%s628 + $0xe8] sm:$0xff] %v687
        %v689 = vld [vmem:[%s627 + $0xf0] sm:$0xff]
        %690 = vst [vmem:[%s628 + $0xf0] sm:$0xff] %v689
        %v691 = vld [vmem:[%s627 + $0xf8] sm:$0xff]
        %692 = vst [vmem:[%s628 + $0xf8] sm:$0xff] %v691
        %v693 = vld [vmem:[%s627 + $0x100] sm:$0xff]
        %694 = vst [vmem:[%s628 + $0x100] sm:$0xff] %v693
        %v695 = vld [vmem:[%s627 + $0x108] sm:$0xff]
        %696 = vst [vmem:[%s628 + $0x108] sm:$0xff] %v695
        %v697 = vld [vmem:[%s627 + $0x110] sm:$0xff]
        %698 = vst [vmem:[%s628 + $0x110] sm:$0xff] %v697
        %v699 = vld [vmem:[%s627 + $0x118] sm:$0xff]
        %700 = vst [vmem:[%s628 + $0x118] sm:$0xff] %v699
        %v701 = vld [vmem:[%s627 + $0x120] sm:$0xff]
        %702 = vst [vmem:[%s628 + $0x120] sm:$0xff] %v701
        %v703 = vld [vmem:[%s627 + $0x128] sm:$0xff]
        %704 = vst [vmem:[%s628 + $0x128] sm:$0xff] %v703
        %v705 = vld [vmem:[%s627 + $0x130] sm:$0xff]
        %706 = vst [vmem:[%s628 + $0x130] sm:$0xff] %v705
        %v707 = vld [vmem:[%s627 + $0x138] sm:$0xff]
        %708 = vst [vmem:[%s628 + $0x138] sm:$0xff] %v707
        %v709 = vld [vmem:[%s627 + $0x140] sm:$0xff]
        %710 = vst [vmem:[%s628 + $0x140] sm:$0xff] %v709
        %v711 = vld [vmem:[%s627 + $0x148] sm:$0xff]
        %712 = vst [vmem:[%s628 + $0x148] sm:$0xff] %v711
        %v713 = vld [vmem:[%s627 + $0x150] sm:$0xff]
        %714 = vst [vmem:[%s628 + $0x150] sm:$0xff] %v713
        %v715 = vld [vmem:[%s627 + $0x158] sm:$0xff]
        %716 = vst [vmem:[%s628 + $0x158] sm:$0xff] %v715
        %v717 = vld [vmem:[%s627 + $0x160] sm:$0xff]
        %718 = vst [vmem:[%s628 + $0x160] sm:$0xff] %v717
        %v719 = vld [vmem:[%s627 + $0x168] sm:$0xff]
        %720 = vst [vmem:[%s628 + $0x168] sm:$0xff] %v719
        %v721 = vld [vmem:[%s627 + $0x170] sm:$0xff]
        %722 = vst [vmem:[%s628 + $0x170] sm:$0xff] %v721
        %v723 = vld [vmem:[%s627 + $0x178] sm:$0xff]
        %724 = vst [vmem:[%s628 + $0x178] sm:$0xff] %v723
        %v725 = vld [vmem:[%s627 + $0x180] sm:$0xff]
        %726 = vst [vmem:[%s628 + $0x180] sm:$0xff] %v725
        %v727 = vld [vmem:[%s627 + $0x188] sm:$0xff]
        %728 = vst [vmem:[%s628 + $0x188] sm:$0xff] %v727
        %v729 = vld [vmem:[%s627 + $0x190] sm:$0xff]
        %730 = vst [vmem:[%s628 + $0x190] sm:$0xff] %v729
        %v731 = vld [vmem:[%s627 + $0x198] sm:$0xff]
        %732 = vst [vmem:[%s628 + $0x198] sm:$0xff] %v731
        %v733 = vld [vmem:[%s627 + $0x1a0] sm:$0xff]
        %734 = vst [vmem:[%s628 + $0x1a0] sm:$0xff] %v733
        %v735 = vld [vmem:[%s627 + $0x1a8] sm:$0xff]
        %736 = vst [vmem:[%s628 + $0x1a8] sm:$0xff] %v735
        %v737 = vld [vmem:[%s627 + $0x1b0] sm:$0xff]
        %738 = vst [vmem:[%s628 + $0x1b0] sm:$0xff] %v737
        %v739 = vld [vmem:[%s627 + $0x1b8] sm:$0xff]
        %740 = vst [vmem:[%s628 + $0x1b8] sm:$0xff] %v739
        %v741 = vld [vmem:[%s627 + $0x1c0] sm:$0xff]
        %742 = vst [vmem:[%s628 + $0x1c0] sm:$0xff] %v741
        %v743 = vld [vmem:[%s627 + $0x1c8] sm:$0xff]
        %744 = vst [vmem:[%s628 + $0x1c8] sm:$0xff] %v743
        %v745 = vld [vmem:[%s627 + $0x1d0] sm:$0xff]
        %746 = vst [vmem:[%s628 + $0x1d0] sm:$0xff] %v745
        %v747 = vld [vmem:[%s627 + $0x1d8] sm:$0xff]
        %748 = vst [vmem:[%s628 + $0x1d8] sm:$0xff] %v747
        %v749 = vld [vmem:[%s627 + $0x1e0] sm:$0xff]
        %750 = vst [vmem:[%s628 + $0x1e0] sm:$0xff] %v749
        %v751 = vld [vmem:[%s627 + $0x1e8] sm:$0xff]
        %752 = vst [vmem:[%s628 + $0x1e8] sm:$0xff] %v751
        %v753 = vld [vmem:[%s627 + $0x1f0] sm:$0xff]
        %754 = vst [vmem:[%s628 + $0x1f0] sm:$0xff] %v753
        %v755 = vld [vmem:[%s627 + $0x1f8] sm:$0xff]
        %756 = vst [vmem:[%s628 + $0x1f8] sm:$0xff] %v755
        %v757 = vld [vmem:[%s627 + $0x200] sm:$0xff]
        %758 = vst [vmem:[%s628 + $0x200] sm:$0xff] %v757
        %v759 = vld [vmem:[%s627 + $0x208] sm:$0xff]
        %760 = vst [vmem:[%s628 + $0x208] sm:$0xff] %v759
        %v761 = vld [vmem:[%s627 + $0x210] sm:$0xff]
        %762 = vst [vmem:[%s628 + $0x210] sm:$0xff] %v761
        %v763 = vld [vmem:[%s627 + $0x218] sm:$0xff]
        %764 = vst [vmem:[%s628 + $0x218] sm:$0xff] %v763
        %v765 = vld [vmem:[%s627 + $0x220] sm:$0xff]
        %766 = vst [vmem:[%s628 + $0x220] sm:$0xff] %v765
        %v767 = vld [vmem:[%s627 + $0x228] sm:$0xff]
        %768 = vst [vmem:[%s628 + $0x228] sm:$0xff] %v767
        %v769 = vld [vmem:[%s627 + $0x230] sm:$0xff]
        %770 = vst [vmem:[%s628 + $0x230] sm:$0xff] %v769
        %v771 = vld [vmem:[%s627 + $0x238] sm:$0xff]
        %772 = vst [vmem:[%s628 + $0x238] sm:$0xff] %v771
        %v773 = vld [vmem:[%s627 + $0x240] sm:$0xff]
        %774 = vst [vmem:[%s628 + $0x240] sm:$0xff] %v773
        %v775 = vld [vmem:[%s627 + $0x248] sm:$0xff]
        %776 = vst [vmem:[%s628 + $0x248] sm:$0xff] %v775
        %v777 = vld [vmem:[%s627 + $0x250] sm:$0xff]
        %778 = vst [vmem:[%s628 + $0x250] sm:$0xff] %v777
        %v779 = vld [vmem:[%s627 + $0x258] sm:$0xff]
        %780 = vst [vmem:[%s628 + $0x258] sm:$0xff] %v779
        %v781 = vld [vmem:[%s627 + $0x260] sm:$0xff]
        %782 = vst [vmem:[%s628 + $0x260] sm:$0xff] %v781
        %v783 = vld [vmem:[%s627 + $0x268] sm:$0xff]
        %784 = vst [vmem:[%s628 + $0x268] sm:$0xff] %v783
        %v785 = vld [vmem:[%s627 + $0x270] sm:$0xff]
        %786 = vst [vmem:[%s628 + $0x270] sm:$0xff] %v785
        %v787 = vld [vmem:[%s627 + $0x278] sm:$0xff]
        %788 = vst [vmem:[%s628 + $0x278] sm:$0xff] %v787
        %v789 = vld [vmem:[%s627 + $0x280] sm:$0xff]
        %790 = vst [vmem:[%s628 + $0x280] sm:$0xff] %v789
        %v791 = vld [vmem:[%s627 + $0x288] sm:$0xff]
        %792 = vst [vmem:[%s628 + $0x288] sm:$0xff] %v791
        %v793 = vld [vmem:[%s627 + $0x290] sm:$0xff]
        %794 = vst [vmem:[%s628 + $0x290] sm:$0xff] %v793
        %v795 = vld [vmem:[%s627 + $0x298] sm:$0xff]
        %796 = vst [vmem:[%s628 + $0x298] sm:$0xff] %v795
        %v797 = vld [vmem:[%s627 + $0x2a0] sm:$0xff]
        %798 = vst [vmem:[%s628 + $0x2a0] sm:$0xff] %v797
        %v799 = vld [vmem:[%s627 + $0x2a8] sm:$0xff]
        %800 = vst [vmem:[%s628 + $0x2a8] sm:$0xff] %v799
        %v801 = vld [vmem:[%s627 + $0x2b0] sm:$0xff]
        %802 = vst [vmem:[%s628 + $0x2b0] sm:$0xff] %v801
        %v803 = vld [vmem:[%s627 + $0x2b8] sm:$0xff]
        %804 = vst [vmem:[%s628 + $0x2b8] sm:$0xff] %v803
        %v805 = vld [vmem:[%s627 + $0x2c0] sm:$0xff]
        %806 = vst [vmem:[%s628 + $0x2c0] sm:$0xff] %v805
        %v807 = vld [vmem:[%s627 + $0x2c8] sm:$0xff]
        %808 = vst [vmem:[%s628 + $0x2c8] sm:$0xff] %v807
        %v809 = vld [vmem:[%s627 + $0x2d0] sm:$0xff]
        %810 = vst [vmem:[%s628 + $0x2d0] sm:$0xff] %v809
        %v811 = vld [vmem:[%s627 + $0x2d8] sm:$0xff]
        %812 = vst [vmem:[%s628 + $0x2d8] sm:$0xff] %v811
        %v813 = vld [vmem:[%s627 + $0x2e0] sm:$0xff]
        %814 = vst [vmem:[%s628 + $0x2e0] sm:$0xff] %v813
        %v815 = vld [vmem:[%s627 + $0x2e8] sm:$0xff]
        %816 = vst [vmem:[%s628 + $0x2e8] sm:$0xff] %v815
        %v817 = vld [vmem:[%s627 + $0x2f0] sm:$0xff]
        %818 = vst [vmem:[%s628 + $0x2f0] sm:$0xff] %v817
        %v819 = vld [vmem:[%s627 + $0x2f8] sm:$0xff]
        %820 = vst [vmem:[%s628 + $0x2f8] sm:$0xff] %v819
        %v821 = vld [vmem:[%s627 + $0x300] sm:$0xff]
        %822 = vst [vmem:[%s628 + $0x300] sm:$0xff] %v821
        %v823 = vld [vmem:[%s627 + $0x308] sm:$0xff]
        %824 = vst [vmem:[%s628 + $0x308] sm:$0xff] %v823
        %v825 = vld [vmem:[%s627 + $0x310] sm:$0xff]
        %826 = vst [vmem:[%s628 + $0x310] sm:$0xff] %v825
        %v827 = vld [vmem:[%s627 + $0x318] sm:$0xff]
        %828 = vst [vmem:[%s628 + $0x318] sm:$0xff] %v827
        %v829 = vld [vmem:[%s627 + $0x320] sm:$0xff]
        %830 = vst [vmem:[%s628 + $0x320] sm:$0xff] %v829
        %v831 = vld [vmem:[%s627 + $0x328] sm:$0xff]
        %832 = vst [vmem:[%s628 + $0x328] sm:$0xff] %v831
        %v833 = vld [vmem:[%s627 + $0x330] sm:$0xff]
        %834 = vst [vmem:[%s628 + $0x330] sm:$0xff] %v833
        %v835 = vld [vmem:[%s627 + $0x338] sm:$0xff]
        %836 = vst [vmem:[%s628 + $0x338] sm:$0xff] %v835
        %v837 = vld [vmem:[%s627 + $0x340] sm:$0xff]
        %838 = vst [vmem:[%s628 + $0x340] sm:$0xff] %v837
        %v839 = vld [vmem:[%s627 + $0x348] sm:$0xff]
        %840 = vst [vmem:[%s628 + $0x348] sm:$0xff] %v839
        %v841 = vld [vmem:[%s627 + $0x350] sm:$0xff]
        %842 = vst [vmem:[%s628 + $0x350] sm:$0xff] %v841
        %v843 = vld [vmem:[%s627 + $0x358] sm:$0xff]
        %844 = vst [vmem:[%s628 + $0x358] sm:$0xff] %v843
        %v845 = vld [vmem:[%s627 + $0x360] sm:$0xff]
        %846 = vst [vmem:[%s628 + $0x360] sm:$0xff] %v845
        %v847 = vld [vmem:[%s627 + $0x368] sm:$0xff]
        %848 = vst [vmem:[%s628 + $0x368] sm:$0xff] %v847
        %v849 = vld [vmem:[%s627 + $0x370] sm:$0xff]
        %850 = vst [vmem:[%s628 + $0x370] sm:$0xff] %v849
        %v851 = vld [vmem:[%s627 + $0x378] sm:$0xff]
        %852 = vst [vmem:[%s628 + $0x378] sm:$0xff] %v851
        %v853 = vld [vmem:[%s627 + $0x380] sm:$0xff]
        %854 = vst [vmem:[%s628 + $0x380] sm:$0xff] %v853
        %v855 = vld [vmem:[%s627 + $0x388] sm:$0xff]
        %856 = vst [vmem:[%s628 + $0x388] sm:$0xff] %v855
        %v857 = vld [vmem:[%s627 + $0x390] sm:$0xff]
        %858 = vst [vmem:[%s628 + $0x390] sm:$0xff] %v857
        %v859 = vld [vmem:[%s627 + $0x398] sm:$0xff]
        %860 = vst [vmem:[%s628 + $0x398] sm:$0xff] %v859
        %v861 = vld [vmem:[%s627 + $0x3a0] sm:$0xff]
        %862 = vst [vmem:[%s628 + $0x3a0] sm:$0xff] %v861
        %v863 = vld [vmem:[%s627 + $0x3a8] sm:$0xff]
        %864 = vst [vmem:[%s628 + $0x3a8] sm:$0xff] %v863
        %v865 = vld [vmem:[%s627 + $0x3b0] sm:$0xff]
        %866 = vst [vmem:[%s628 + $0x3b0] sm:$0xff] %v865
        %v867 = vld [vmem:[%s627 + $0x3b8] sm:$0xff]
        %868 = vst [vmem:[%s628 + $0x3b8] sm:$0xff] %v867
        %v869 = vld [vmem:[%s627 + $0x3c0] sm:$0xff]
        %870 = vst [vmem:[%s628 + $0x3c0] sm:$0xff] %v869
        %v871 = vld [vmem:[%s627 + $0x3c8] sm:$0xff]
        %872 = vst [vmem:[%s628 + $0x3c8] sm:$0xff] %v871
        %v873 = vld [vmem:[%s627 + $0x3d0] sm:$0xff]
        %874 = vst [vmem:[%s628 + $0x3d0] sm:$0xff] %v873
        %v875 = vld [vmem:[%s627 + $0x3d8] sm:$0xff]
        %876 = vst [vmem:[%s628 + $0x3d8] sm:$0xff] %v875
        %v877 = vld [vmem:[%s627 + $0x3e0] sm:$0xff]
        %878 = vst [vmem:[%s628 + $0x3e0] sm:$0xff] %v877
      $region93: #{tpu_custom_call.1} parent=87 // loop_footer
        %s626 = sadd.s32 1, %s622
      $region94: #{tpu_custom_call.1} parent=87 // loop_footer_branch
        %621 = sbr.rel target = $region90
      $region95: #{tpu_custom_call.1} parent=87 // loop_exit
        _
    $region88: #{tpu_custom_call.1} parent=72 // pred_fallthru
      _
    %p879 = pneg %p617
    // Predicated region
    $region96: #{tpu_custom_call.1} parent=72 // pred_check
      _
    $region97: #{tpu_custom_call.1} parent=72 // pred_check_branch
      %881 = sbr.rel (%p617) target = $region99
    $region98: #{tpu_custom_call.1} parent=72 // pred_region
      %s882 = sand.u32 1000, 7
    $region99: #{tpu_custom_call.1} parent=72 // pred_fallthru
      _
  $region73: #{tpu_custom_call.1} parent=0 // pred_fallthru
    _
  // Predicated region
  $region74: #{tpu_custom_call.1} parent=0 // pred_check
    %p602 = pneg %p598
  $region75: #{tpu_custom_call.1} parent=0 // pred_check_branch
    %604 = sbr.rel (%p602) target = $region77
  $region76: #{tpu_custom_call.1} parent=0 // pred_region
    %s605 = sshllo.u32 0, 1000
    loop: start=0, step=1, limit=1
    $region78: #{tpu_custom_call.1} parent=76 // loop_pre_header
      _
    $region79: #{tpu_custom_call.1} parent=76 // loop_header
      %s607 = sphi 0, %s611
      %p608 = scmp.ge.s32.totalorder %s607, 1
      %s612 = sphi %s2, %s2
      %s613 = sphi %s7, %s7
    $region80: #{tpu_custom_call.1} parent=76 // loop_header_branch
      %610 = sbr.rel (%p608) target = $region84
    $region81: #{tpu_custom_call.1} parent=76 // loop_body
      %v614 = vld [vmem:[%s612] sm:%s605]
      %615 = vst [vmem:[%s613] sm:%s605] %v614
    $region82: #{tpu_custom_call.1} parent=76 // loop_footer
      %s611 = sadd.s32 1, %s607
    $region83: #{tpu_custom_call.1} parent=76 // loop_footer_branch
      %606 = sbr.rel target = $region79
    $region84: #{tpu_custom_call.1} parent=76 // loop_exit
      _
  $region77: #{tpu_custom_call.1} parent=0 // pred_fallthru
    _
  // Predicated region
  $region100: #{tpu_custom_call.1} parent=0 // pred_check
    _
  $region101: #{tpu_custom_call.1} parent=0 // pred_check_branch
    %885 = sbr.rel (0) target = $region103
  $region102: #{tpu_custom_call.1} parent=0 // pred_region
    %886 = vsyncadd %s596, 16000
  $region103: #{tpu_custom_call.1} parent=0 // pred_fallthru
    _
  %s887 = scalar_lea.sflag [#allocation2], 3
  %p889 = scmp.lt.u32.totalorder 1000, 8
  %p890 = pneg %p889
  // Predicated region
  $region104: #{tpu_custom_call.1} parent=0 // pred_check
    _
  $region105: #{tpu_custom_call.1} parent=0 // pred_check_branch
    %892 = sbr.rel (%p889) target = $region107
  $region106: #{tpu_custom_call.1} parent=0 // pred_region
    %s907 = sand.u32 1000, 7
    %p908 = scmp.eq.s32.totalorder %s907, 0
    // Predicated region
    $region119: #{tpu_custom_call.1} parent=106 // pred_check
      %p909 = pneg %p908
    $region120: #{tpu_custom_call.1} parent=106 // pred_check_branch
      %911 = sbr.rel (%p909) target = $region122
    $region121: #{tpu_custom_call.1} parent=106 // pred_region
      loop: start=0, step=1, limit=1
      $region123: #{tpu_custom_call.1} parent=121 // loop_pre_header
        _
      $region124: #{tpu_custom_call.1} parent=121 // loop_header
        %s913 = sphi 0, %s917
        %p914 = scmp.ge.s32.totalorder %s913, 1
        %s918 = sphi %s3, %s3
        %s919 = sphi %s8, %s8
      $region125: #{tpu_custom_call.1} parent=121 // loop_header_branch
        %916 = sbr.rel (%p914) target = $region129
      $region126: #{tpu_custom_call.1} parent=121 // loop_body
        %v920 = vld [vmem:[%s918] sm:$0xff]
        %921 = vst [vmem:[%s919] sm:$0xff] %v920
        %v922 = vld [vmem:[%s918 + $0x8] sm:$0xff]
        %923 = vst [vmem:[%s919 + $0x8] sm:$0xff] %v922
        %v924 = vld [vmem:[%s918 + $0x10] sm:$0xff]
        %925 = vst [vmem:[%s919 + $0x10] sm:$0xff] %v924
        %v926 = vld [vmem:[%s918 + $0x18] sm:$0xff]
        %927 = vst [vmem:[%s919 + $0x18] sm:$0xff] %v926
        %v928 = vld [vmem:[%s918 + $0x20] sm:$0xff]
        %929 = vst [vmem:[%s919 + $0x20] sm:$0xff] %v928
        %v930 = vld [vmem:[%s918 + $0x28] sm:$0xff]
        %931 = vst [vmem:[%s919 + $0x28] sm:$0xff] %v930
        %v932 = vld [vmem:[%s918 + $0x30] sm:$0xff]
        %933 = vst [vmem:[%s919 + $0x30] sm:$0xff] %v932
        %v934 = vld [vmem:[%s918 + $0x38] sm:$0xff]
        %935 = vst [vmem:[%s919 + $0x38] sm:$0xff] %v934
        %v936 = vld [vmem:[%s918 + $0x40] sm:$0xff]
        %937 = vst [vmem:[%s919 + $0x40] sm:$0xff] %v936
        %v938 = vld [vmem:[%s918 + $0x48] sm:$0xff]
        %939 = vst [vmem:[%s919 + $0x48] sm:$0xff] %v938
        %v940 = vld [vmem:[%s918 + $0x50] sm:$0xff]
        %941 = vst [vmem:[%s919 + $0x50] sm:$0xff] %v940
        %v942 = vld [vmem:[%s918 + $0x58] sm:$0xff]
        %943 = vst [vmem:[%s919 + $0x58] sm:$0xff] %v942
        %v944 = vld [vmem:[%s918 + $0x60] sm:$0xff]
        %945 = vst [vmem:[%s919 + $0x60] sm:$0xff] %v944
        %v946 = vld [vmem:[%s918 + $0x68] sm:$0xff]
        %947 = vst [vmem:[%s919 + $0x68] sm:$0xff] %v946
        %v948 = vld [vmem:[%s918 + $0x70] sm:$0xff]
        %949 = vst [vmem:[%s919 + $0x70] sm:$0xff] %v948
        %v950 = vld [vmem:[%s918 + $0x78] sm:$0xff]
        %951 = vst [vmem:[%s919 + $0x78] sm:$0xff] %v950
        %v952 = vld [vmem:[%s918 + $0x80] sm:$0xff]
        %953 = vst [vmem:[%s919 + $0x80] sm:$0xff] %v952
        %v954 = vld [vmem:[%s918 + $0x88] sm:$0xff]
        %955 = vst [vmem:[%s919 + $0x88] sm:$0xff] %v954
        %v956 = vld [vmem:[%s918 + $0x90] sm:$0xff]
        %957 = vst [vmem:[%s919 + $0x90] sm:$0xff] %v956
        %v958 = vld [vmem:[%s918 + $0x98] sm:$0xff]
        %959 = vst [vmem:[%s919 + $0x98] sm:$0xff] %v958
        %v960 = vld [vmem:[%s918 + $0xa0] sm:$0xff]
        %961 = vst [vmem:[%s919 + $0xa0] sm:$0xff] %v960
        %v962 = vld [vmem:[%s918 + $0xa8] sm:$0xff]
        %963 = vst [vmem:[%s919 + $0xa8] sm:$0xff] %v962
        %v964 = vld [vmem:[%s918 + $0xb0] sm:$0xff]
        %965 = vst [vmem:[%s919 + $0xb0] sm:$0xff] %v964
        %v966 = vld [vmem:[%s918 + $0xb8] sm:$0xff]
        %967 = vst [vmem:[%s919 + $0xb8] sm:$0xff] %v966
        %v968 = vld [vmem:[%s918 + $0xc0] sm:$0xff]
        %969 = vst [vmem:[%s919 + $0xc0] sm:$0xff] %v968
        %v970 = vld [vmem:[%s918 + $0xc8] sm:$0xff]
        %971 = vst [vmem:[%s919 + $0xc8] sm:$0xff] %v970
        %v972 = vld [vmem:[%s918 + $0xd0] sm:$0xff]
        %973 = vst [vmem:[%s919 + $0xd0] sm:$0xff] %v972
        %v974 = vld [vmem:[%s918 + $0xd8] sm:$0xff]
        %975 = vst [vmem:[%s919 + $0xd8] sm:$0xff] %v974
        %v976 = vld [vmem:[%s918 + $0xe0] sm:$0xff]
        %977 = vst [vmem:[%s919 + $0xe0] sm:$0xff] %v976
        %v978 = vld [vmem:[%s918 + $0xe8] sm:$0xff]
        %979 = vst [vmem:[%s919 + $0xe8] sm:$0xff] %v978
        %v980 = vld [vmem:[%s918 + $0xf0] sm:$0xff]
        %981 = vst [vmem:[%s919 + $0xf0] sm:$0xff] %v980
        %v982 = vld [vmem:[%s918 + $0xf8] sm:$0xff]
        %983 = vst [vmem:[%s919 + $0xf8] sm:$0xff] %v982
        %v984 = vld [vmem:[%s918 + $0x100] sm:$0xff]
        %985 = vst [vmem:[%s919 + $0x100] sm:$0xff] %v984
        %v986 = vld [vmem:[%s918 + $0x108] sm:$0xff]
        %987 = vst [vmem:[%s919 + $0x108] sm:$0xff] %v986
        %v988 = vld [vmem:[%s918 + $0x110] sm:$0xff]
        %989 = vst [vmem:[%s919 + $0x110] sm:$0xff] %v988
        %v990 = vld [vmem:[%s918 + $0x118] sm:$0xff]
        %991 = vst [vmem:[%s919 + $0x118] sm:$0xff] %v990
        %v992 = vld [vmem:[%s918 + $0x120] sm:$0xff]
        %993 = vst [vmem:[%s919 + $0x120] sm:$0xff] %v992
        %v994 = vld [vmem:[%s918 + $0x128] sm:$0xff]
        %995 = vst [vmem:[%s919 + $0x128] sm:$0xff] %v994
        %v996 = vld [vmem:[%s918 + $0x130] sm:$0xff]
        %997 = vst [vmem:[%s919 + $0x130] sm:$0xff] %v996
        %v998 = vld [vmem:[%s918 + $0x138] sm:$0xff]
        %999 = vst [vmem:[%s919 + $0x138] sm:$0xff] %v998
        %v1000 = vld [vmem:[%s918 + $0x140] sm:$0xff]
        %1001 = vst [vmem:[%s919 + $0x140] sm:$0xff] %v1000
        %v1002 = vld [vmem:[%s918 + $0x148] sm:$0xff]
        %1003 = vst [vmem:[%s919 + $0x148] sm:$0xff] %v1002
        %v1004 = vld [vmem:[%s918 + $0x150] sm:$0xff]
        %1005 = vst [vmem:[%s919 + $0x150] sm:$0xff] %v1004
        %v1006 = vld [vmem:[%s918 + $0x158] sm:$0xff]
        %1007 = vst [vmem:[%s919 + $0x158] sm:$0xff] %v1006
        %v1008 = vld [vmem:[%s918 + $0x160] sm:$0xff]
        %1009 = vst [vmem:[%s919 + $0x160] sm:$0xff] %v1008
        %v1010 = vld [vmem:[%s918 + $0x168] sm:$0xff]
        %1011 = vst [vmem:[%s919 + $0x168] sm:$0xff] %v1010
        %v1012 = vld [vmem:[%s918 + $0x170] sm:$0xff]
        %1013 = vst [vmem:[%s919 + $0x170] sm:$0xff] %v1012
        %v1014 = vld [vmem:[%s918 + $0x178] sm:$0xff]
        %1015 = vst [vmem:[%s919 + $0x178] sm:$0xff] %v1014
        %v1016 = vld [vmem:[%s918 + $0x180] sm:$0xff]
        %1017 = vst [vmem:[%s919 + $0x180] sm:$0xff] %v1016
        %v1018 = vld [vmem:[%s918 + $0x188] sm:$0xff]
        %1019 = vst [vmem:[%s919 + $0x188] sm:$0xff] %v1018
        %v1020 = vld [vmem:[%s918 + $0x190] sm:$0xff]
        %1021 = vst [vmem:[%s919 + $0x190] sm:$0xff] %v1020
        %v1022 = vld [vmem:[%s918 + $0x198] sm:$0xff]
        %1023 = vst [vmem:[%s919 + $0x198] sm:$0xff] %v1022
        %v1024 = vld [vmem:[%s918 + $0x1a0] sm:$0xff]
        %1025 = vst [vmem:[%s919 + $0x1a0] sm:$0xff] %v1024
        %v1026 = vld [vmem:[%s918 + $0x1a8] sm:$0xff]
        %1027 = vst [vmem:[%s919 + $0x1a8] sm:$0xff] %v1026
        %v1028 = vld [vmem:[%s918 + $0x1b0] sm:$0xff]
        %1029 = vst [vmem:[%s919 + $0x1b0] sm:$0xff] %v1028
        %v1030 = vld [vmem:[%s918 + $0x1b8] sm:$0xff]
        %1031 = vst [vmem:[%s919 + $0x1b8] sm:$0xff] %v1030
        %v1032 = vld [vmem:[%s918 + $0x1c0] sm:$0xff]
        %1033 = vst [vmem:[%s919 + $0x1c0] sm:$0xff] %v1032
        %v1034 = vld [vmem:[%s918 + $0x1c8] sm:$0xff]
        %1035 = vst [vmem:[%s919 + $0x1c8] sm:$0xff] %v1034
        %v1036 = vld [vmem:[%s918 + $0x1d0] sm:$0xff]
        %1037 = vst [vmem:[%s919 + $0x1d0] sm:$0xff] %v1036
        %v1038 = vld [vmem:[%s918 + $0x1d8] sm:$0xff]
        %1039 = vst [vmem:[%s919 + $0x1d8] sm:$0xff] %v1038
        %v1040 = vld [vmem:[%s918 + $0x1e0] sm:$0xff]
        %1041 = vst [vmem:[%s919 + $0x1e0] sm:$0xff] %v1040
        %v1042 = vld [vmem:[%s918 + $0x1e8] sm:$0xff]
        %1043 = vst [vmem:[%s919 + $0x1e8] sm:$0xff] %v1042
        %v1044 = vld [vmem:[%s918 + $0x1f0] sm:$0xff]
        %1045 = vst [vmem:[%s919 + $0x1f0] sm:$0xff] %v1044
        %v1046 = vld [vmem:[%s918 + $0x1f8] sm:$0xff]
        %1047 = vst [vmem:[%s919 + $0x1f8] sm:$0xff] %v1046
        %v1048 = vld [vmem:[%s918 + $0x200] sm:$0xff]
        %1049 = vst [vmem:[%s919 + $0x200] sm:$0xff] %v1048
        %v1050 = vld [vmem:[%s918 + $0x208] sm:$0xff]
        %1051 = vst [vmem:[%s919 + $0x208] sm:$0xff] %v1050
        %v1052 = vld [vmem:[%s918 + $0x210] sm:$0xff]
        %1053 = vst [vmem:[%s919 + $0x210] sm:$0xff] %v1052
        %v1054 = vld [vmem:[%s918 + $0x218] sm:$0xff]
        %1055 = vst [vmem:[%s919 + $0x218] sm:$0xff] %v1054
        %v1056 = vld [vmem:[%s918 + $0x220] sm:$0xff]
        %1057 = vst [vmem:[%s919 + $0x220] sm:$0xff] %v1056
        %v1058 = vld [vmem:[%s918 + $0x228] sm:$0xff]
        %1059 = vst [vmem:[%s919 + $0x228] sm:$0xff] %v1058
        %v1060 = vld [vmem:[%s918 + $0x230] sm:$0xff]
        %1061 = vst [vmem:[%s919 + $0x230] sm:$0xff] %v1060
        %v1062 = vld [vmem:[%s918 + $0x238] sm:$0xff]
        %1063 = vst [vmem:[%s919 + $0x238] sm:$0xff] %v1062
        %v1064 = vld [vmem:[%s918 + $0x240] sm:$0xff]
        %1065 = vst [vmem:[%s919 + $0x240] sm:$0xff] %v1064
        %v1066 = vld [vmem:[%s918 + $0x248] sm:$0xff]
        %1067 = vst [vmem:[%s919 + $0x248] sm:$0xff] %v1066
        %v1068 = vld [vmem:[%s918 + $0x250] sm:$0xff]
        %1069 = vst [vmem:[%s919 + $0x250] sm:$0xff] %v1068
        %v1070 = vld [vmem:[%s918 + $0x258] sm:$0xff]
        %1071 = vst [vmem:[%s919 + $0x258] sm:$0xff] %v1070
        %v1072 = vld [vmem:[%s918 + $0x260] sm:$0xff]
        %1073 = vst [vmem:[%s919 + $0x260] sm:$0xff] %v1072
        %v1074 = vld [vmem:[%s918 + $0x268] sm:$0xff]
        %1075 = vst [vmem:[%s919 + $0x268] sm:$0xff] %v1074
        %v1076 = vld [vmem:[%s918 + $0x270] sm:$0xff]
        %1077 = vst [vmem:[%s919 + $0x270] sm:$0xff] %v1076
        %v1078 = vld [vmem:[%s918 + $0x278] sm:$0xff]
        %1079 = vst [vmem:[%s919 + $0x278] sm:$0xff] %v1078
        %v1080 = vld [vmem:[%s918 + $0x280] sm:$0xff]
        %1081 = vst [vmem:[%s919 + $0x280] sm:$0xff] %v1080
        %v1082 = vld [vmem:[%s918 + $0x288] sm:$0xff]
        %1083 = vst [vmem:[%s919 + $0x288] sm:$0xff] %v1082
        %v1084 = vld [vmem:[%s918 + $0x290] sm:$0xff]
        %1085 = vst [vmem:[%s919 + $0x290] sm:$0xff] %v1084
        %v1086 = vld [vmem:[%s918 + $0x298] sm:$0xff]
        %1087 = vst [vmem:[%s919 + $0x298] sm:$0xff] %v1086
        %v1088 = vld [vmem:[%s918 + $0x2a0] sm:$0xff]
        %1089 = vst [vmem:[%s919 + $0x2a0] sm:$0xff] %v1088
        %v1090 = vld [vmem:[%s918 + $0x2a8] sm:$0xff]
        %1091 = vst [vmem:[%s919 + $0x2a8] sm:$0xff] %v1090
        %v1092 = vld [vmem:[%s918 + $0x2b0] sm:$0xff]
        %1093 = vst [vmem:[%s919 + $0x2b0] sm:$0xff] %v1092
        %v1094 = vld [vmem:[%s918 + $0x2b8] sm:$0xff]
        %1095 = vst [vmem:[%s919 + $0x2b8] sm:$0xff] %v1094
        %v1096 = vld [vmem:[%s918 + $0x2c0] sm:$0xff]
        %1097 = vst [vmem:[%s919 + $0x2c0] sm:$0xff] %v1096
        %v1098 = vld [vmem:[%s918 + $0x2c8] sm:$0xff]
        %1099 = vst [vmem:[%s919 + $0x2c8] sm:$0xff] %v1098
        %v1100 = vld [vmem:[%s918 + $0x2d0] sm:$0xff]
        %1101 = vst [vmem:[%s919 + $0x2d0] sm:$0xff] %v1100
        %v1102 = vld [vmem:[%s918 + $0x2d8] sm:$0xff]
        %1103 = vst [vmem:[%s919 + $0x2d8] sm:$0xff] %v1102
        %v1104 = vld [vmem:[%s918 + $0x2e0] sm:$0xff]
        %1105 = vst [vmem:[%s919 + $0x2e0] sm:$0xff] %v1104
        %v1106 = vld [vmem:[%s918 + $0x2e8] sm:$0xff]
        %1107 = vst [vmem:[%s919 + $0x2e8] sm:$0xff] %v1106
        %v1108 = vld [vmem:[%s918 + $0x2f0] sm:$0xff]
        %1109 = vst [vmem:[%s919 + $0x2f0] sm:$0xff] %v1108
        %v1110 = vld [vmem:[%s918 + $0x2f8] sm:$0xff]
        %1111 = vst [vmem:[%s919 + $0x2f8] sm:$0xff] %v1110
        %v1112 = vld [vmem:[%s918 + $0x300] sm:$0xff]
        %1113 = vst [vmem:[%s919 + $0x300] sm:$0xff] %v1112
        %v1114 = vld [vmem:[%s918 + $0x308] sm:$0xff]
        %1115 = vst [vmem:[%s919 + $0x308] sm:$0xff] %v1114
        %v1116 = vld [vmem:[%s918 + $0x310] sm:$0xff]
        %1117 = vst [vmem:[%s919 + $0x310] sm:$0xff] %v1116
        %v1118 = vld [vmem:[%s918 + $0x318] sm:$0xff]
        %1119 = vst [vmem:[%s919 + $0x318] sm:$0xff] %v1118
        %v1120 = vld [vmem:[%s918 + $0x320] sm:$0xff]
        %1121 = vst [vmem:[%s919 + $0x320] sm:$0xff] %v1120
        %v1122 = vld [vmem:[%s918 + $0x328] sm:$0xff]
        %1123 = vst [vmem:[%s919 + $0x328] sm:$0xff] %v1122
        %v1124 = vld [vmem:[%s918 + $0x330] sm:$0xff]
        %1125 = vst [vmem:[%s919 + $0x330] sm:$0xff] %v1124
        %v1126 = vld [vmem:[%s918 + $0x338] sm:$0xff]
        %1127 = vst [vmem:[%s919 + $0x338] sm:$0xff] %v1126
        %v1128 = vld [vmem:[%s918 + $0x340] sm:$0xff]
        %1129 = vst [vmem:[%s919 + $0x340] sm:$0xff] %v1128
        %v1130 = vld [vmem:[%s918 + $0x348] sm:$0xff]
        %1131 = vst [vmem:[%s919 + $0x348] sm:$0xff] %v1130
        %v1132 = vld [vmem:[%s918 + $0x350] sm:$0xff]
        %1133 = vst [vmem:[%s919 + $0x350] sm:$0xff] %v1132
        %v1134 = vld [vmem:[%s918 + $0x358] sm:$0xff]
        %1135 = vst [vmem:[%s919 + $0x358] sm:$0xff] %v1134
        %v1136 = vld [vmem:[%s918 + $0x360] sm:$0xff]
        %1137 = vst [vmem:[%s919 + $0x360] sm:$0xff] %v1136
        %v1138 = vld [vmem:[%s918 + $0x368] sm:$0xff]
        %1139 = vst [vmem:[%s919 + $0x368] sm:$0xff] %v1138
        %v1140 = vld [vmem:[%s918 + $0x370] sm:$0xff]
        %1141 = vst [vmem:[%s919 + $0x370] sm:$0xff] %v1140
        %v1142 = vld [vmem:[%s918 + $0x378] sm:$0xff]
        %1143 = vst [vmem:[%s919 + $0x378] sm:$0xff] %v1142
        %v1144 = vld [vmem:[%s918 + $0x380] sm:$0xff]
        %1145 = vst [vmem:[%s919 + $0x380] sm:$0xff] %v1144
        %v1146 = vld [vmem:[%s918 + $0x388] sm:$0xff]
        %1147 = vst [vmem:[%s919 + $0x388] sm:$0xff] %v1146
        %v1148 = vld [vmem:[%s918 + $0x390] sm:$0xff]
        %1149 = vst [vmem:[%s919 + $0x390] sm:$0xff] %v1148
        %v1150 = vld [vmem:[%s918 + $0x398] sm:$0xff]
        %1151 = vst [vmem:[%s919 + $0x398] sm:$0xff] %v1150
        %v1152 = vld [vmem:[%s918 + $0x3a0] sm:$0xff]
        %1153 = vst [vmem:[%s919 + $0x3a0] sm:$0xff] %v1152
        %v1154 = vld [vmem:[%s918 + $0x3a8] sm:$0xff]
        %1155 = vst [vmem:[%s919 + $0x3a8] sm:$0xff] %v1154
        %v1156 = vld [vmem:[%s918 + $0x3b0] sm:$0xff]
        %1157 = vst [vmem:[%s919 + $0x3b0] sm:$0xff] %v1156
        %v1158 = vld [vmem:[%s918 + $0x3b8] sm:$0xff]
        %1159 = vst [vmem:[%s919 + $0x3b8] sm:$0xff] %v1158
        %v1160 = vld [vmem:[%s918 + $0x3c0] sm:$0xff]
        %1161 = vst [vmem:[%s919 + $0x3c0] sm:$0xff] %v1160
        %v1162 = vld [vmem:[%s918 + $0x3c8] sm:$0xff]
        %1163 = vst [vmem:[%s919 + $0x3c8] sm:$0xff] %v1162
        %v1164 = vld [vmem:[%s918 + $0x3d0] sm:$0xff]
        %1165 = vst [vmem:[%s919 + $0x3d0] sm:$0xff] %v1164
        %v1166 = vld [vmem:[%s918 + $0x3d8] sm:$0xff]
        %1167 = vst [vmem:[%s919 + $0x3d8] sm:$0xff] %v1166
        %v1168 = vld [vmem:[%s918 + $0x3e0] sm:$0xff]
        %1169 = vst [vmem:[%s919 + $0x3e0] sm:$0xff] %v1168
      $region127: #{tpu_custom_call.1} parent=121 // loop_footer
        %s917 = sadd.s32 1, %s913
      $region128: #{tpu_custom_call.1} parent=121 // loop_footer_branch
        %912 = sbr.rel target = $region124
      $region129: #{tpu_custom_call.1} parent=121 // loop_exit
        _
    $region122: #{tpu_custom_call.1} parent=106 // pred_fallthru
      _
    %p1170 = pneg %p908
    // Predicated region
    $region130: #{tpu_custom_call.1} parent=106 // pred_check
      _
    $region131: #{tpu_custom_call.1} parent=106 // pred_check_branch
      %1172 = sbr.rel (%p908) target = $region133
    $region132: #{tpu_custom_call.1} parent=106 // pred_region
      %s1173 = sand.u32 1000, 7
    $region133: #{tpu_custom_call.1} parent=106 // pred_fallthru
      _
  $region107: #{tpu_custom_call.1} parent=0 // pred_fallthru
    _
  // Predicated region
  $region108: #{tpu_custom_call.1} parent=0 // pred_check
    %p893 = pneg %p889
  $region109: #{tpu_custom_call.1} parent=0 // pred_check_branch
    %895 = sbr.rel (%p893) target = $region111
  $region110: #{tpu_custom_call.1} parent=0 // pred_region
    %s896 = sshllo.u32 0, 1000
    loop: start=0, step=1, limit=1
    $region112: #{tpu_custom_call.1} parent=110 // loop_pre_header
      _
    $region113: #{tpu_custom_call.1} parent=110 // loop_header
      %s898 = sphi 0, %s902
      %p899 = scmp.ge.s32.totalorder %s898, 1
      %s903 = sphi %s3, %s3
      %s904 = sphi %s8, %s8
    $region114: #{tpu_custom_call.1} parent=110 // loop_header_branch
      %901 = sbr.rel (%p899) target = $region118
    $region115: #{tpu_custom_call.1} parent=110 // loop_body
      %v905 = vld [vmem:[%s903] sm:%s896]
      %906 = vst [vmem:[%s904] sm:%s896] %v905
    $region116: #{tpu_custom_call.1} parent=110 // loop_footer
      %s902 = sadd.s32 1, %s898
    $region117: #{tpu_custom_call.1} parent=110 // loop_footer_branch
      %897 = sbr.rel target = $region113
    $region118: #{tpu_custom_call.1} parent=110 // loop_exit
      _
  $region111: #{tpu_custom_call.1} parent=0 // pred_fallthru
    _
  // Predicated region
  $region134: #{tpu_custom_call.1} parent=0 // pred_check
    _
  $region135: #{tpu_custom_call.1} parent=0 // pred_check_branch
    %1176 = sbr.rel (0) target = $region137
  $region136: #{tpu_custom_call.1} parent=0 // pred_region
    %1177 = vsyncadd %s887, 16000
  $region137: #{tpu_custom_call.1} parent=0 // pred_fallthru
    _
  %s1178 = scalar_lea.sflag [#allocation2], 4
  %p1180 = scmp.lt.u32.totalorder 500, 8
  %p1181 = pneg %p1180
  // Predicated region
  $region138: #{tpu_custom_call.1} parent=0 // pred_check
    _
  $region139: #{tpu_custom_call.1} parent=0 // pred_check_branch
    %1183 = sbr.rel (%p1180) target = $region141
  $region140: #{tpu_custom_call.1} parent=0 // pred_region
    %s1198 = sand.u32 500, 7
    %p1199 = scmp.eq.s32.totalorder %s1198, 0
    %p1200 = pneg %p1199
    // Predicated region
    $region153: #{tpu_custom_call.1} parent=140 // pred_check
      _
    $region154: #{tpu_custom_call.1} parent=140 // pred_check_branch
      %1202 = sbr.rel (%p1199) target = $region156
    $region155: #{tpu_custom_call.1} parent=140 // pred_region
      %s1203 = sand.u32 500, 7
      %s1204 = ssub.s32 500, %s1203
      %s1205 = scalar_lea.vmem %s4, %s1204
      %s1206 = ssub.s32 500, %s1203
      %s1207 = scalar_lea.vmem %s9, %s1206
      loop: start=0, step=1, limit=1
      $region157: #{tpu_custom_call.1} parent=155 // loop_pre_header
        _
      $region158: #{tpu_custom_call.1} parent=155 // loop_header
        %s1209 = sphi 0, %s1213
        %p1210 = scmp.ge.s32.totalorder %s1209, 1
        %s1214 = sphi %s4, %s4
        %s1215 = sphi %s9, %s9
      $region159: #{tpu_custom_call.1} parent=155 // loop_header_branch
        %1212 = sbr.rel (%p1210) target = $region163
      $region160: #{tpu_custom_call.1} parent=155 // loop_body
        %v1216 = vld [vmem:[%s1214] sm:$0xff]
        %1217 = vst [vmem:[%s1215] sm:$0xff] %v1216
        %v1218 = vld [vmem:[%s1214 + $0x8] sm:$0xff]
        %1219 = vst [vmem:[%s1215 + $0x8] sm:$0xff] %v1218
        %v1220 = vld [vmem:[%s1214 + $0x10] sm:$0xff]
        %1221 = vst [vmem:[%s1215 + $0x10] sm:$0xff] %v1220
        %v1222 = vld [vmem:[%s1214 + $0x18] sm:$0xff]
        %1223 = vst [vmem:[%s1215 + $0x18] sm:$0xff] %v1222
        %v1224 = vld [vmem:[%s1214 + $0x20] sm:$0xff]
        %1225 = vst [vmem:[%s1215 + $0x20] sm:$0xff] %v1224
        %v1226 = vld [vmem:[%s1214 + $0x28] sm:$0xff]
        %1227 = vst [vmem:[%s1215 + $0x28] sm:$0xff] %v1226
        %v1228 = vld [vmem:[%s1214 + $0x30] sm:$0xff]
        %1229 = vst [vmem:[%s1215 + $0x30] sm:$0xff] %v1228
        %v1230 = vld [vmem:[%s1214 + $0x38] sm:$0xff]
        %1231 = vst [vmem:[%s1215 + $0x38] sm:$0xff] %v1230
        %v1232 = vld [vmem:[%s1214 + $0x40] sm:$0xff]
        %1233 = vst [vmem:[%s1215 + $0x40] sm:$0xff] %v1232
        %v1234 = vld [vmem:[%s1214 + $0x48] sm:$0xff]
        %1235 = vst [vmem:[%s1215 + $0x48] sm:$0xff] %v1234
        %v1236 = vld [vmem:[%s1214 + $0x50] sm:$0xff]
        %1237 = vst [vmem:[%s1215 + $0x50] sm:$0xff] %v1236
        %v1238 = vld [vmem:[%s1214 + $0x58] sm:$0xff]
        %1239 = vst [vmem:[%s1215 + $0x58] sm:$0xff] %v1238
        %v1240 = vld [vmem:[%s1214 + $0x60] sm:$0xff]
        %1241 = vst [vmem:[%s1215 + $0x60] sm:$0xff] %v1240
        %v1242 = vld [vmem:[%s1214 + $0x68] sm:$0xff]
        %1243 = vst [vmem:[%s1215 + $0x68] sm:$0xff] %v1242
        %v1244 = vld [vmem:[%s1214 + $0x70] sm:$0xff]
        %1245 = vst [vmem:[%s1215 + $0x70] sm:$0xff] %v1244
        %v1246 = vld [vmem:[%s1214 + $0x78] sm:$0xff]
        %1247 = vst [vmem:[%s1215 + $0x78] sm:$0xff] %v1246
        %v1248 = vld [vmem:[%s1214 + $0x80] sm:$0xff]
        %1249 = vst [vmem:[%s1215 + $0x80] sm:$0xff] %v1248
        %v1250 = vld [vmem:[%s1214 + $0x88] sm:$0xff]
        %1251 = vst [vmem:[%s1215 + $0x88] sm:$0xff] %v1250
        %v1252 = vld [vmem:[%s1214 + $0x90] sm:$0xff]
        %1253 = vst [vmem:[%s1215 + $0x90] sm:$0xff] %v1252
        %v1254 = vld [vmem:[%s1214 + $0x98] sm:$0xff]
        %1255 = vst [vmem:[%s1215 + $0x98] sm:$0xff] %v1254
        %v1256 = vld [vmem:[%s1214 + $0xa0] sm:$0xff]
        %1257 = vst [vmem:[%s1215 + $0xa0] sm:$0xff] %v1256
        %v1258 = vld [vmem:[%s1214 + $0xa8] sm:$0xff]
        %1259 = vst [vmem:[%s1215 + $0xa8] sm:$0xff] %v1258
        %v1260 = vld [vmem:[%s1214 + $0xb0] sm:$0xff]
        %1261 = vst [vmem:[%s1215 + $0xb0] sm:$0xff] %v1260
        %v1262 = vld [vmem:[%s1214 + $0xb8] sm:$0xff]
        %1263 = vst [vmem:[%s1215 + $0xb8] sm:$0xff] %v1262
        %v1264 = vld [vmem:[%s1214 + $0xc0] sm:$0xff]
        %1265 = vst [vmem:[%s1215 + $0xc0] sm:$0xff] %v1264
        %v1266 = vld [vmem:[%s1214 + $0xc8] sm:$0xff]
        %1267 = vst [vmem:[%s1215 + $0xc8] sm:$0xff] %v1266
        %v1268 = vld [vmem:[%s1214 + $0xd0] sm:$0xff]
        %1269 = vst [vmem:[%s1215 + $0xd0] sm:$0xff] %v1268
        %v1270 = vld [vmem:[%s1214 + $0xd8] sm:$0xff]
        %1271 = vst [vmem:[%s1215 + $0xd8] sm:$0xff] %v1270
        %v1272 = vld [vmem:[%s1214 + $0xe0] sm:$0xff]
        %1273 = vst [vmem:[%s1215 + $0xe0] sm:$0xff] %v1272
        %v1274 = vld [vmem:[%s1214 + $0xe8] sm:$0xff]
        %1275 = vst [vmem:[%s1215 + $0xe8] sm:$0xff] %v1274
        %v1276 = vld [vmem:[%s1214 + $0xf0] sm:$0xff]
        %1277 = vst [vmem:[%s1215 + $0xf0] sm:$0xff] %v1276
        %v1278 = vld [vmem:[%s1214 + $0xf8] sm:$0xff]
        %1279 = vst [vmem:[%s1215 + $0xf8] sm:$0xff] %v1278
        %v1280 = vld [vmem:[%s1214 + $0x100] sm:$0xff]
        %1281 = vst [vmem:[%s1215 + $0x100] sm:$0xff] %v1280
        %v1282 = vld [vmem:[%s1214 + $0x108] sm:$0xff]
        %1283 = vst [vmem:[%s1215 + $0x108] sm:$0xff] %v1282
        %v1284 = vld [vmem:[%s1214 + $0x110] sm:$0xff]
        %1285 = vst [vmem:[%s1215 + $0x110] sm:$0xff] %v1284
        %v1286 = vld [vmem:[%s1214 + $0x118] sm:$0xff]
        %1287 = vst [vmem:[%s1215 + $0x118] sm:$0xff] %v1286
        %v1288 = vld [vmem:[%s1214 + $0x120] sm:$0xff]
        %1289 = vst [vmem:[%s1215 + $0x120] sm:$0xff] %v1288
        %v1290 = vld [vmem:[%s1214 + $0x128] sm:$0xff]
        %1291 = vst [vmem:[%s1215 + $0x128] sm:$0xff] %v1290
        %v1292 = vld [vmem:[%s1214 + $0x130] sm:$0xff]
        %1293 = vst [vmem:[%s1215 + $0x130] sm:$0xff] %v1292
        %v1294 = vld [vmem:[%s1214 + $0x138] sm:$0xff]
        %1295 = vst [vmem:[%s1215 + $0x138] sm:$0xff] %v1294
        %v1296 = vld [vmem:[%s1214 + $0x140] sm:$0xff]
        %1297 = vst [vmem:[%s1215 + $0x140] sm:$0xff] %v1296
        %v1298 = vld [vmem:[%s1214 + $0x148] sm:$0xff]
        %1299 = vst [vmem:[%s1215 + $0x148] sm:$0xff] %v1298
        %v1300 = vld [vmem:[%s1214 + $0x150] sm:$0xff]
        %1301 = vst [vmem:[%s1215 + $0x150] sm:$0xff] %v1300
        %v1302 = vld [vmem:[%s1214 + $0x158] sm:$0xff]
        %1303 = vst [vmem:[%s1215 + $0x158] sm:$0xff] %v1302
        %v1304 = vld [vmem:[%s1214 + $0x160] sm:$0xff]
        %1305 = vst [vmem:[%s1215 + $0x160] sm:$0xff] %v1304
        %v1306 = vld [vmem:[%s1214 + $0x168] sm:$0xff]
        %1307 = vst [vmem:[%s1215 + $0x168] sm:$0xff] %v1306
        %v1308 = vld [vmem:[%s1214 + $0x170] sm:$0xff]
        %1309 = vst [vmem:[%s1215 + $0x170] sm:$0xff] %v1308
        %v1310 = vld [vmem:[%s1214 + $0x178] sm:$0xff]
        %1311 = vst [vmem:[%s1215 + $0x178] sm:$0xff] %v1310
        %v1312 = vld [vmem:[%s1214 + $0x180] sm:$0xff]
        %1313 = vst [vmem:[%s1215 + $0x180] sm:$0xff] %v1312
        %v1314 = vld [vmem:[%s1214 + $0x188] sm:$0xff]
        %1315 = vst [vmem:[%s1215 + $0x188] sm:$0xff] %v1314
        %v1316 = vld [vmem:[%s1214 + $0x190] sm:$0xff]
        %1317 = vst [vmem:[%s1215 + $0x190] sm:$0xff] %v1316
        %v1318 = vld [vmem:[%s1214 + $0x198] sm:$0xff]
        %1319 = vst [vmem:[%s1215 + $0x198] sm:$0xff] %v1318
        %v1320 = vld [vmem:[%s1214 + $0x1a0] sm:$0xff]
        %1321 = vst [vmem:[%s1215 + $0x1a0] sm:$0xff] %v1320
        %v1322 = vld [vmem:[%s1214 + $0x1a8] sm:$0xff]
        %1323 = vst [vmem:[%s1215 + $0x1a8] sm:$0xff] %v1322
        %v1324 = vld [vmem:[%s1214 + $0x1b0] sm:$0xff]
        %1325 = vst [vmem:[%s1215 + $0x1b0] sm:$0xff] %v1324
        %v1326 = vld [vmem:[%s1214 + $0x1b8] sm:$0xff]
        %1327 = vst [vmem:[%s1215 + $0x1b8] sm:$0xff] %v1326
        %v1328 = vld [vmem:[%s1214 + $0x1c0] sm:$0xff]
        %1329 = vst [vmem:[%s1215 + $0x1c0] sm:$0xff] %v1328
        %v1330 = vld [vmem:[%s1214 + $0x1c8] sm:$0xff]
        %1331 = vst [vmem:[%s1215 + $0x1c8] sm:$0xff] %v1330
        %v1332 = vld [vmem:[%s1214 + $0x1d0] sm:$0xff]
        %1333 = vst [vmem:[%s1215 + $0x1d0] sm:$0xff] %v1332
        %v1334 = vld [vmem:[%s1214 + $0x1d8] sm:$0xff]
        %1335 = vst [vmem:[%s1215 + $0x1d8] sm:$0xff] %v1334
        %v1336 = vld [vmem:[%s1214 + $0x1e0] sm:$0xff]
        %1337 = vst [vmem:[%s1215 + $0x1e0] sm:$0xff] %v1336
        %v1338 = vld [vmem:[%s1214 + $0x1e8] sm:$0xff]
        %1339 = vst [vmem:[%s1215 + $0x1e8] sm:$0xff] %v1338
      $region161: #{tpu_custom_call.1} parent=155 // loop_footer
        %s1213 = sadd.s32 1, %s1209
      $region162: #{tpu_custom_call.1} parent=155 // loop_footer_branch
        %1208 = sbr.rel target = $region158
      $region163: #{tpu_custom_call.1} parent=155 // loop_exit
        _
      %s1340 = sshllo.u32 0, %s1203
      loop: start=0, step=1, limit=1
      $region164: #{tpu_custom_call.1} parent=155 // loop_pre_header
        _
      $region165: #{tpu_custom_call.1} parent=155 // loop_header
        %s1342 = sphi 0, %s1346
        %p1343 = scmp.ge.s32.totalorder %s1342, 1
        %s1347 = sphi %s1205, %s1205
        %s1348 = sphi %s1207, %s1207
      $region166: #{tpu_custom_call.1} parent=155 // loop_header_branch
        %1345 = sbr.rel (%p1343) target = $region170
      $region167: #{tpu_custom_call.1} parent=155 // loop_body
        %v1349 = vld [vmem:[%s1347] sm:%s1340]
        %1350 = vst [vmem:[%s1348] sm:%s1340] %v1349
      $region168: #{tpu_custom_call.1} parent=155 // loop_footer
        %s1346 = sadd.s32 1, %s1342
      $region169: #{tpu_custom_call.1} parent=155 // loop_footer_branch
        %1341 = sbr.rel target = $region165
      $region170: #{tpu_custom_call.1} parent=155 // loop_exit
        _
    $region156: #{tpu_custom_call.1} parent=140 // pred_fallthru
      _
  $region141: #{tpu_custom_call.1} parent=0 // pred_fallthru
    _
  // Predicated region
  $region142: #{tpu_custom_call.1} parent=0 // pred_check
    %p1184 = pneg %p1180
  $region143: #{tpu_custom_call.1} parent=0 // pred_check_branch
    %1186 = sbr.rel (%p1184) target = $region145
  $region144: #{tpu_custom_call.1} parent=0 // pred_region
    %s1187 = sshllo.u32 0, 500
    loop: start=0, step=1, limit=1
    $region146: #{tpu_custom_call.1} parent=144 // loop_pre_header
      _
    $region147: #{tpu_custom_call.1} parent=144 // loop_header
      %s1189 = sphi 0, %s1193
      %p1190 = scmp.ge.s32.totalorder %s1189, 1
      %s1194 = sphi %s4, %s4
      %s1195 = sphi %s9, %s9
    $region148: #{tpu_custom_call.1} parent=144 // loop_header_branch
      %1192 = sbr.rel (%p1190) target = $region152
    $region149: #{tpu_custom_call.1} parent=144 // loop_body
      %v1196 = vld [vmem:[%s1194] sm:%s1187]
      %1197 = vst [vmem:[%s1195] sm:%s1187] %v1196
    $region150: #{tpu_custom_call.1} parent=144 // loop_footer
      %s1193 = sadd.s32 1, %s1189
    $region151: #{tpu_custom_call.1} parent=144 // loop_footer_branch
      %1188 = sbr.rel target = $region147
    $region152: #{tpu_custom_call.1} parent=144 // loop_exit
      _
  $region145: #{tpu_custom_call.1} parent=0 // pred_fallthru
    _
  // Predicated region
  $region171: #{tpu_custom_call.1} parent=0 // pred_check
    _
  $region172: #{tpu_custom_call.1} parent=0 // pred_check_branch
    %1353 = sbr.rel (0) target = $region174
  $region173: #{tpu_custom_call.1} parent=0 // pred_region
    %1354 = vsyncadd %s1178, 8000
  $region174: #{tpu_custom_call.1} parent=0 // pred_fallthru
    _
  %s1355 = smul.u32 1000, 1
  %s1356 = sshll.u32 %s1355, 4
  %1357 = dma.done [#allocation2], %s1356
  %s1358 = sshll.u32 %s1355, 4
  %1359 = dma.done %s305, %s1358
  %s1360 = sshll.u32 %s1355, 4
  %1361 = dma.done %s596, %s1360
  %s1362 = sshll.u32 %s1355, 4
  %1363 = dma.done %s887, %s1362
  %s1364 = smul.u32 4, 125
  %s1365 = smul.u32 %s1364, 1
  %s1366 = sshll.u32 %s1365, 4
  %1367 = dma.done %s1178, %s1366
  %1368 = vsyncmov [#allocation2]
  %s1369 = vpop.sfrf %1368
  %p1370 = scmp.eq.s32.totalorder %s1369, 0
  %p1371 = pneg %p1370
  %1373 = shalt.err (%p1371)
  %s1374 = scalar_lea.sflag [#allocation2], 1
  %1375 = vsyncmov %s1374
  %s1376 = vpop.sfrf %1375
  %p1377 = scmp.eq.s32.totalorder %s1376, 0
  %p1378 = pneg %p1377
  %1380 = shalt.err (%p1378)
  %s1381 = scalar_lea.sflag [#allocation2], 2
  %1382 = vsyncmov %s1381
  %s1383 = vpop.sfrf %1382
  %p1384 = scmp.eq.s32.totalorder %s1383, 0
  %p1385 = pneg %p1384
  %1387 = shalt.err (%p1385)
  %s1388 = scalar_lea.sflag [#allocation2], 3
  %1389 = vsyncmov %s1388
  %s1390 = vpop.sfrf %1389
  %p1391 = scmp.eq.s32.totalorder %s1390, 0
  %p1392 = pneg %p1391
  %1394 = shalt.err (%p1392)
  %s1395 = scalar_lea.sflag [#allocation2], 4
  %1396 = vsyncmov %s1395
  %s1397 = vpop.sfrf %1396
  %p1398 = scmp.eq.s32.totalorder %s1397, 0
  %p1399 = pneg %p1398
  %1401 = shalt.err (%p1399)

</llo_original>
